<compile_context>
chip_gen: v6e
topology: v6e:2x2x1
jax: 0.10.0
libtpu: 0.0.40
codegen_flags: <defaults>
</compile_context>

<pallas_src>
import functools

import jax
import jax.numpy as jnp
from jax.experimental import pallas as pl
from jax.experimental.pallas import tpu as pltpu

KH = KW = 3  # kernel_size = 3


# ---------------------------------------------------------------------------
# Kernel 1: 3x3 dilated conv for one image + per-channel partial BN stats.
# ---------------------------------------------------------------------------
def _conv_kernel(x_ref, w_ref, o_ref, sum_ref, ssq_ref, xpad_ref, *, H, W, d):
    # x_ref:    (1, H, W, Cin)     one image, NHWC
    # w_ref:    (Cout, KH*KW*Cin)  taps flattened in (kh, kw, cin) order
    # o_ref:    (1, Cout, H*W)     lane-dense conv output
    # sum_ref:  (1, Cout, 1)       per-image per-channel sum
    # ssq_ref:  (1, Cout, 1)       per-image per-channel sum of squares
    # xpad_ref: VMEM scratch (H+2d, W+2d, Cin) -- zero halo built in-kernel
    Cin = x_ref.shape[3]
    Cout = o_ref.shape[1]

    # Zero-fill the halo buffer, then copy the interior (static offsets).
    xpad_ref[...] = jnp.zeros(xpad_ref.shape, xpad_ref.dtype)
    xpad_ref[pl.ds(d, H), pl.ds(d, W), :] = x_ref[0]

    # im2col: 9 shifted views concatenated along the contraction axis.
    # Static python loops -> static slices; reshape (H, W, Cin)->(H*W, Cin) is
    # layout-preserving (minor dim unchanged, second-minor a multiple of 8).
    taps = []
    for kh in range(KH):
        for kw in range(KW):
            tap = xpad_ref[pl.ds(kh * d, H), pl.ds(kw * d, W), :]  # (H, W, Cin)
            taps.append(tap.reshape(H * W, Cin))
    patch = jnp.concatenate(taps, axis=1)                          # (H*W, 9*Cin)

    # Single MXU pass with K = 9*Cin, contracting the minor dims of both
    # operands (A @ B^T form) -> lane-dense (Cout, H*W) accumulator.
    acc = jax.lax.dot_general(
        w_ref[...], patch,
        dimension_numbers=(((1,), (1,)), ((), ())),
        preferred_element_type=jnp.float32)                        # (Cout, H*W)

    o_ref[...] = acc.reshape(1, Cout, H * W)
    sum_ref[...] = jnp.sum(acc, axis=1, keepdims=True).reshape(1, Cout, 1)
    ssq_ref[...] = jnp.sum(acc * acc, axis=1, keepdims=True).reshape(1, Cout, 1)


# ---------------------------------------------------------------------------
# Kernel 2: BatchNorm2d (biased batch stats over N,H,W) + ReLU, tiled over N.
# ---------------------------------------------------------------------------
def _bn_relu_kernel(x_ref, sum_ref, ssq_ref, gamma_ref, beta_ref, o_ref, *,
                    count, eps):
    # x_ref:   (1, Cout, H*W)   this image's conv output
    # sum_ref: (N, Cout, 1)     per-image channel sums (all images)
    # ssq_ref: (N, Cout, 1)     per-image channel sums of squares
    # gamma_ref, beta_ref: (Cout, 1)
    Cout = x_ref.shape[1]
    HW = x_ref.shape[2]

    s = jnp.sum(sum_ref[...], axis=0)                # (Cout, 1)
    sq = jnp.sum(ssq_ref[...], axis=0)               # (Cout, 1)
    inv_n = 1.0 / count
    mean = s * inv_n
    var = sq * inv_n - mean * mean                   # biased variance (BN train)
    inv_std = jax.lax.rsqrt(var + eps)               # EUP slot
    scale = gamma_ref[...] * inv_std                 # (Cout, 1)
    shift = beta_ref[...] - mean * scale             # (Cout, 1)

    y = x_ref[0] * scale + shift                     # broadcast over lanes
    o_ref[...] = jnp.maximum(y, 0.0).reshape(1, Cout, HW)


# ---------------------------------------------------------------------------
# Wrapper: layout plumbing + pallas_call glue.  Takes PyTorch-convention
# NCHW input / OIHW weight, returns NCHW output.
# ---------------------------------------------------------------------------
@functools.partial(jax.jit, static_argnames=("dilation", "eps"))
def conv_bnr_forward(x_nchw, w_oihw, gamma, beta, *, dilation=1, eps=1e-5):
    N, Cin, H, W = x_nchw.shape
    Cout = w_oihw.shape[0]
    d = dilation
    Hp, Wp = H + 2 * d, W + 2 * d
    HW = H * W

    x_nhwc = jnp.transpose(x_nchw, (0, 2, 3, 1))                   # (N, H, W, Cin)
    # Weight in (Cout, kh, kw, cin) order, flattened to (Cout, 9*Cin) -- matches
    # the tap/column ordering built inside the kernel.
    w_r = jnp.transpose(w_oihw, (0, 2, 3, 1)).reshape(Cout, KH * KW * Cin)
    w_r = w_r.astype(jnp.float32)

    conv_out, csum, cssq = pl.pallas_call(
        functools.partial(_conv_kernel, H=H, W=W, d=d),
        grid=(N,),
        in_specs=[
            pl.BlockSpec((1, H, W, Cin), lambda n: (n, 0, 0, 0)),
            pl.BlockSpec((Cout, KH * KW * Cin), lambda n: (0, 0)),
        ],
        out_specs=(
            pl.BlockSpec((1, Cout, HW), lambda n: (n, 0, 0)),
            pl.BlockSpec((1, Cout, 1), lambda n: (n, 0, 0)),
            pl.BlockSpec((1, Cout, 1), lambda n: (n, 0, 0)),
        ),
        out_shape=(
            jax.ShapeDtypeStruct((N, Cout, HW), jnp.float32),
            jax.ShapeDtypeStruct((N, Cout, 1), jnp.float32),
            jax.ShapeDtypeStruct((N, Cout, 1), jnp.float32),
        ),
        scratch_shapes=[pltpu.VMEM((Hp, Wp, Cin), jnp.float32)],
        compiler_params=pltpu.CompilerParams(dimension_semantics=("parallel",)),
    )(x_nhwc.astype(jnp.float32), w_r)

    out = pl.pallas_call(
        functools.partial(_bn_relu_kernel, count=float(N * HW), eps=float(eps)),
        grid=(N,),
        in_specs=[
            pl.BlockSpec((1, Cout, HW), lambda n: (n, 0, 0)),
            pl.BlockSpec((N, Cout, 1), lambda n: (0, 0, 0)),
            pl.BlockSpec((N, Cout, 1), lambda n: (0, 0, 0)),
            pl.BlockSpec((Cout, 1), lambda n: (0, 0)),
            pl.BlockSpec((Cout, 1), lambda n: (0, 0)),
        ],
        out_specs=pl.BlockSpec((1, Cout, HW), lambda n: (n, 0, 0)),
        out_shape=jax.ShapeDtypeStruct((N, Cout, HW), jnp.float32),
        input_output_aliases={0: 0},   # BN+ReLU written over the conv buffer
        compiler_params=pltpu.CompilerParams(dimension_semantics=("parallel",)),
    )(conv_out, csum, cssq,
      gamma.reshape(Cout, 1).astype(jnp.float32),
      beta.reshape(Cout, 1).astype(jnp.float32))

    # (N, Cout, H*W) -> (N, Cout, H, W): already NCHW-flat, free reshape.
    return out.reshape(N, Cout, H, W)


if __name__ == "__main__":
    # Small shapes consistent with the module: batch=2, inplanes=4, planes=8, 16x16.
    N, Cin, Cout, H, W = 2, 4, 8, 16, 16
    dilation = 1
    eps = 1e-5

    key = jax.random.PRNGKey(0)
    kx, kw, kg, kb = jax.random.split(key, 4)
    x_nchw = jax.random.normal(kx, (N, Cin, H, W), dtype=jnp.float32)
    w_oihw = jax.random.normal(kw, (Cout, Cin, KH, KW), dtype=jnp.float32) * 0.1
    gamma = 1.0 + 0.1 * jax.random.normal(kg, (Cout,), dtype=jnp.float32)
    beta = 0.1 * jax.random.normal(kb, (Cout,), dtype=jnp.float32)

    y = conv_bnr_forward(x_nchw, w_oihw, gamma, beta, dilation=dilation, eps=eps)
    y = jax.block_until_ready(y)

    # Pure-JAX reference (same semantics as the PyTorch forward in train mode).
    x_nhwc = jnp.transpose(x_nchw, (0, 2, 3, 1))
    w_hwio = jnp.transpose(w_oihw, (2, 3, 1, 0))
    conv_ref = jax.lax.conv_general_dilated(
        x_nhwc, w_hwio, window_strides=(1, 1),
        padding=[(dilation, dilation), (dilation, dilation)],
        rhs_dilation=(dilation, dilation),
        dimension_numbers=("NHWC", "HWIO", "NHWC"))
    mean = conv_ref.mean(axis=(0, 1, 2), keepdims=True)
    var = ((conv_ref - mean) ** 2).mean(axis=(0, 1, 2), keepdims=True)
    ref = jnp.maximum(
        (conv_ref - mean) * jax.lax.rsqrt(var + eps)
        * gamma.reshape(1, 1, 1, -1) + beta.reshape(1, 1, 1, -1), 0.0)
    ref_nchw = jnp.transpose(ref, (0, 3, 1, 2))

    assert jnp.allclose(y, ref_nchw, atol=1e-4, rtol=1e-4), "mismatch vs reference"
    print("KERNEL_OK")
</pallas_src>

<mosaic_0001>
module attributes {stable_mosaic.version = 11 : i64} {
  func.func @_conv_kernel(%arg0: i32, %arg1: memref<1x16x16x4xf32, #tpu.memory_space<vmem>>, %arg2: memref<8x36xf32, #tpu.memory_space<vmem>>, %arg3: memref<1x8x256xf32, #tpu.memory_space<vmem>>, %arg4: memref<1x8x1xf32, #tpu.memory_space<vmem>>, %arg5: memref<1x8x1xf32, #tpu.memory_space<vmem>>, %arg6: memref<18x18x4xf32, #tpu.memory_space<vmem>>) attributes {dimension_semantics = [#tpu.dimension_semantics<parallel>], iteration_bounds = array<i64: 2>, scalar_prefetch = 0 : i64, scratch_operands = 1 : i64, tpu.core_type = #tpu.core_type<tc>, window_params = [{transform_indices = @transform_0, window_bounds = array<i64: 1, 16, 16, 4>}, {pipeline_mode = #tpu.pipeline_mode<synchronous>, transform_indices = @transform_1, window_bounds = array<i64: 8, 36>}, {transform_indices = @transform_2, window_bounds = array<i64: 1, 8, 256>}, {transform_indices = @transform_3, window_bounds = array<i64: 1, 8, 1>}, {transform_indices = @transform_4, window_bounds = array<i64: 1, 8, 1>}]} {
    %cst = arith.constant 0.000000e+00 : f32
    %0 = vector.broadcast %cst : f32 to vector<18x18x4xf32>
    %c0 = arith.constant 0 : index
    %c0_0 = arith.constant 0 : index
    %c0_1 = arith.constant 0 : index
    %1 = vector.load %arg6[%c0, %c0_0, %c0_1] : memref<18x18x4xf32, #tpu.memory_space<vmem>>, vector<18x18x4xf32>
    tpu.vector_store %arg6[%c0, %c0_0, %c0_1], %0 {strides = array<i32>} : memref<18x18x4xf32, #tpu.memory_space<vmem>>, vector<18x18x4xf32>,
    %c0_2 = arith.constant 0 : index
    %c0_3 = arith.constant 0 : index
    %c0_4 = arith.constant 0 : index
    %c0_5 = arith.constant 0 : index
    %2 = vector.load %arg1[%c0_2, %c0_3, %c0_4, %c0_5] : memref<1x16x16x4xf32, #tpu.memory_space<vmem>>, vector<1x16x16x4xf32>
    %3 = vector.shape_cast %2 : vector<1x16x16x4xf32> to vector<16x16x4xf32>
    %c1 = arith.constant 1 : index
    %c1_6 = arith.constant 1 : index
    %c0_7 = arith.constant 0 : index
    %4 = vector.load %arg6[%c1, %c1_6, %c0_7] : memref<18x18x4xf32, #tpu.memory_space<vmem>>, vector<16x16x4xf32>
    tpu.vector_store %arg6[%c1, %c1_6, %c0_7], %3 {strides = array<i32>} : memref<18x18x4xf32, #tpu.memory_space<vmem>>, vector<16x16x4xf32>,
    %c0_8 = arith.constant 0 : index
    %c0_9 = arith.constant 0 : index
    %c0_10 = arith.constant 0 : index
    %5 = vector.load %arg6[%c0_8, %c0_9, %c0_10] : memref<18x18x4xf32, #tpu.memory_space<vmem>>, vector<16x16x4xf32>
    %6 = vector.shape_cast %5 : vector<16x16x4xf32> to vector<256x4xf32>
    %c0_11 = arith.constant 0 : index
    %c1_12 = arith.constant 1 : index
    %c0_13 = arith.constant 0 : index
    %7 = vector.load %arg6[%c0_11, %c1_12, %c0_13] : memref<18x18x4xf32, #tpu.memory_space<vmem>>, vector<16x16x4xf32>
    %8 = vector.shape_cast %7 : vector<16x16x4xf32> to vector<256x4xf32>
    %c0_14 = arith.constant 0 : index
    %c2 = arith.constant 2 : index
    %c0_15 = arith.constant 0 : index
    %9 = vector.load %arg6[%c0_14, %c2, %c0_15] : memref<18x18x4xf32, #tpu.memory_space<vmem>>, vector<16x16x4xf32>
    %10 = vector.shape_cast %9 : vector<16x16x4xf32> to vector<256x4xf32>
    %c1_16 = arith.constant 1 : index
    %c0_17 = arith.constant 0 : index
    %c0_18 = arith.constant 0 : index
    %11 = vector.load %arg6[%c1_16, %c0_17, %c0_18] : memref<18x18x4xf32, #tpu.memory_space<vmem>>, vector<16x16x4xf32>
    %12 = vector.shape_cast %11 : vector<16x16x4xf32> to vector<256x4xf32>
    %c1_19 = arith.constant 1 : index
    %c1_20 = arith.constant 1 : index
    %c0_21 = arith.constant 0 : index
    %13 = vector.load %arg6[%c1_19, %c1_20, %c0_21] : memref<18x18x4xf32, #tpu.memory_space<vmem>>, vector<16x16x4xf32>
    %14 = vector.shape_cast %13 : vector<16x16x4xf32> to vector<256x4xf32>
    %c1_22 = arith.constant 1 : index
    %c2_23 = arith.constant 2 : index
    %c0_24 = arith.constant 0 : index
    %15 = vector.load %arg6[%c1_22, %c2_23, %c0_24] : memref<18x18x4xf32, #tpu.memory_space<vmem>>, vector<16x16x4xf32>
    %16 = vector.shape_cast %15 : vector<16x16x4xf32> to vector<256x4xf32>
    %c2_25 = arith.constant 2 : index
    %c0_26 = arith.constant 0 : index
    %c0_27 = arith.constant 0 : index
    %17 = vector.load %arg6[%c2_25, %c0_26, %c0_27] : memref<18x18x4xf32, #tpu.memory_space<vmem>>, vector<16x16x4xf32>
    %18 = vector.shape_cast %17 : vector<16x16x4xf32> to vector<256x4xf32>
    %c2_28 = arith.constant 2 : index
    %c1_29 = arith.constant 1 : index
    %c0_30 = arith.constant 0 : index
    %19 = vector.load %arg6[%c2_28, %c1_29, %c0_30] : memref<18x18x4xf32, #tpu.memory_space<vmem>>, vector<16x16x4xf32>
    %20 = vector.shape_cast %19 : vector<16x16x4xf32> to vector<256x4xf32>
    %c2_31 = arith.constant 2 : index
    %c2_32 = arith.constant 2 : index
    %c0_33 = arith.constant 0 : index
    %21 = vector.load %arg6[%c2_31, %c2_32, %c0_33] : memref<18x18x4xf32, #tpu.memory_space<vmem>>, vector<16x16x4xf32>
    %22 = vector.shape_cast %21 : vector<16x16x4xf32> to vector<256x4xf32>
    %23 = tpu.concatenate %6, %8, %10, %12, %14, %16, %18, %20, %22 in 1 : vector<256x4xf32>, vector<256x4xf32>, vector<256x4xf32>, vector<256x4xf32>, vector<256x4xf32>, vector<256x4xf32>, vector<256x4xf32>, vector<256x4xf32>, vector<256x4xf32> -> vector<256x36xf32>
    %c0_34 = arith.constant 0 : index
    %c0_35 = arith.constant 0 : index
    %24 = vector.load %arg2[%c0_34, %c0_35] : memref<8x36xf32, #tpu.memory_space<vmem>>, vector<8x36xf32>
    %cst_36 = arith.constant dense<0.000000e+00> : vector<8x256xf32>
    %25 = tpu.matmul %24, %23, %cst_36 {dimension_numbers = #tpu.dot_dimension_numbers<[1], [1], [0], [0], [0, 0, 1, 0], [], []>} : vector<8x36xf32>, vector<256x36xf32>, vector<8x256xf32> -> vector<8x256xf32>
    %26 = vector.shape_cast %25 : vector<8x256xf32> to vector<1x8x256xf32>
    %c0_37 = arith.constant 0 : index
    %c0_38 = arith.constant 0 : index
    %c0_39 = arith.constant 0 : index
    %27 = vector.load %arg3[%c0_37, %c0_38, %c0_39] : memref<1x8x256xf32, #tpu.memory_space<vmem>>, vector<1x8x256xf32>
    tpu.vector_store %arg3[%c0_37, %c0_38, %c0_39], %26 {strides = array<i32>} : memref<1x8x256xf32, #tpu.memory_space<vmem>>, vector<1x8x256xf32>,
    %cst_40 = arith.constant dense<0.000000e+00> : vector<8xf32>
    %28 = vector.multi_reduction <add>, %25, %cst_40 [1] : vector<8x256xf32> to vector<8xf32>
    %29 = vector.shape_cast %28 : vector<8xf32> to vector<8x1xf32>
    %30 = vector.shape_cast %29 : vector<8x1xf32> to vector<1x8x1xf32>
    %c0_41 = arith.constant 0 : index
    %c0_42 = arith.constant 0 : index
    %c0_43 = arith.constant 0 : index
    %31 = vector.load %arg4[%c0_41, %c0_42, %c0_43] : memref<1x8x1xf32, #tpu.memory_space<vmem>>, vector<1x8x1xf32>
    tpu.vector_store %arg4[%c0_41, %c0_42, %c0_43], %30 {strides = array<i32>} : memref<1x8x1xf32, #tpu.memory_space<vmem>>, vector<1x8x1xf32>,
    %32 = arith.mulf %25, %25 : vector<8x256xf32>
    %cst_44 = arith.constant dense<0.000000e+00> : vector<8xf32>
    %33 = vector.multi_reduction <add>, %32, %cst_44 [1] : vector<8x256xf32> to vector<8xf32>
    %34 = vector.shape_cast %33 : vector<8xf32> to vector<8x1xf32>
    %35 = vector.shape_cast %34 : vector<8x1xf32> to vector<1x8x1xf32>
    %c0_45 = arith.constant 0 : index
    %c0_46 = arith.constant 0 : index
    %c0_47 = arith.constant 0 : index
    %36 = vector.load %arg5[%c0_45, %c0_46, %c0_47] : memref<1x8x1xf32, #tpu.memory_space<vmem>>, vector<1x8x1xf32>
    tpu.vector_store %arg5[%c0_45, %c0_46, %c0_47], %35 {strides = array<i32>} : memref<1x8x1xf32, #tpu.memory_space<vmem>>, vector<1x8x1xf32>,
    return
  }
  func.func @transform_0(%arg0: i32) -> (i32, i32, i32, i32) {
    %c0_i32 = arith.constant 0 : i32
    %c0_i32_0 = arith.constant 0 : i32
    %c0_i32_1 = arith.constant 0 : i32
    %c0_i32_2 = arith.constant 0 : i32
    return %arg0, %c0_i32, %c0_i32_0, %c0_i32_1 : i32, i32, i32, i32
  }
  func.func @transform_1(%arg0: i32) -> (i32, i32) {
    %c0_i32 = arith.constant 0 : i32
    %c0_i32_0 = arith.constant 0 : i32
    %c0_i32_1 = arith.constant 0 : i32
    return %c0_i32, %c0_i32_0 : i32, i32
  }
  func.func @transform_2(%arg0: i32) -> (i32, i32, i32) {
    %c0_i32 = arith.constant 0 : i32
    %c0_i32_0 = arith.constant 0 : i32
    %c0_i32_1 = arith.constant 0 : i32
    return %arg0, %c0_i32, %c0_i32_0 : i32, i32, i32
  }
  func.func @transform_3(%arg0: i32) -> (i32, i32, i32) {
    %c0_i32 = arith.constant 0 : i32
    %c0_i32_0 = arith.constant 0 : i32
    %c0_i32_1 = arith.constant 0 : i32
    return %arg0, %c0_i32, %c0_i32_0 : i32, i32, i32
  }
  func.func @transform_4(%arg0: i32) -> (i32, i32, i32) {
    %c0_i32 = arith.constant 0 : i32
    %c0_i32_0 = arith.constant 0 : i32
    %c0_i32_1 = arith.constant 0 : i32
    return %arg0, %c0_i32, %c0_i32_0 : i32, i32, i32
  }
}

module attributes {stable_mosaic.version = 11 : i64} {
  func.func @_bn_relu_kernel(%arg0: i32, %arg1: memref<1x8x256xf32, #tpu.memory_space<vmem>>, %arg2: memref<2x8x1xf32, #tpu.memory_space<vmem>>, %arg3: memref<2x8x1xf32, #tpu.memory_space<vmem>>, %arg4: memref<8x1xf32, #tpu.memory_space<vmem>>, %arg5: memref<8x1xf32, #tpu.memory_space<vmem>>, %arg6: memref<1x8x256xf32, #tpu.memory_space<vmem>>) attributes {dimension_semantics = [#tpu.dimension_semantics<parallel>], iteration_bounds = array<i64: 2>, scalar_prefetch = 0 : i64, scratch_operands = 0 : i64, tpu.core_type = #tpu.core_type<tc>, window_params = [{transform_indices = @transform_0, window_bounds = array<i64: 1, 8, 256>}, {pipeline_mode = #tpu.pipeline_mode<synchronous>, transform_indices = @transform_1, window_bounds = array<i64: 2, 8, 1>}, {pipeline_mode = #tpu.pipeline_mode<synchronous>, transform_indices = @transform_2, window_bounds = array<i64: 2, 8, 1>}, {pipeline_mode = #tpu.pipeline_mode<synchronous>, transform_indices = @transform_3, window_bounds = array<i64: 8, 1>}, {pipeline_mode = #tpu.pipeline_mode<synchronous>, transform_indices = @transform_4, window_bounds = array<i64: 8, 1>}, {transform_indices = @transform_5, window_bounds = array<i64: 1, 8, 256>}]} {
    %c0 = arith.constant 0 : index
    %c0_0 = arith.constant 0 : index
    %c0_1 = arith.constant 0 : index
    %0 = vector.load %arg2[%c0, %c0_0, %c0_1] : memref<2x8x1xf32, #tpu.memory_space<vmem>>, vector<2x8x1xf32>
    %cst = arith.constant dense<0.000000e+00> : vector<8x1xf32>
    %1 = vector.multi_reduction <add>, %0, %cst [0] : vector<2x8x1xf32> to vector<8x1xf32>
    %c0_2 = arith.constant 0 : index
    %c0_3 = arith.constant 0 : index
    %c0_4 = arith.constant 0 : index
    %2 = vector.load %arg3[%c0_2, %c0_3, %c0_4] : memref<2x8x1xf32, #tpu.memory_space<vmem>>, vector<2x8x1xf32>
    %cst_5 = arith.constant dense<0.000000e+00> : vector<8x1xf32>
    %3 = vector.multi_reduction <add>, %2, %cst_5 [0] : vector<2x8x1xf32> to vector<8x1xf32>
    %cst_6 = arith.constant 0.001953125 : f32
    %4 = vector.broadcast %cst_6 : f32 to vector<8x1xf32>
    %5 = arith.mulf %1, %4 : vector<8x1xf32>
    %cst_7 = arith.constant 0.001953125 : f32
    %6 = vector.broadcast %cst_7 : f32 to vector<8x1xf32>
    %7 = arith.mulf %3, %6 : vector<8x1xf32>
    %8 = arith.mulf %5, %5 : vector<8x1xf32>
    %9 = arith.subf %7, %8 : vector<8x1xf32>
    %cst_8 = arith.constant 9.99999974E-6 : f32
    %10 = vector.broadcast %cst_8 : f32 to vector<8x1xf32>
    %11 = arith.addf %9, %10 : vector<8x1xf32>
    %12 = math.rsqrt %11 : vector<8x1xf32>
    %c0_9 = arith.constant 0 : index
    %c0_10 = arith.constant 0 : index
    %13 = vector.load %arg4[%c0_9, %c0_10] : memref<8x1xf32, #tpu.memory_space<vmem>>, vector<8x1xf32>
    %14 = arith.mulf %13, %12 : vector<8x1xf32>
    %c0_11 = arith.constant 0 : index
    %c0_12 = arith.constant 0 : index
    %15 = vector.load %arg5[%c0_11, %c0_12] : memref<8x1xf32, #tpu.memory_space<vmem>>, vector<8x1xf32>
    %16 = arith.mulf %5, %14 : vector<8x1xf32>
    %17 = arith.subf %15, %16 : vector<8x1xf32>
    %c0_13 = arith.constant 0 : index
    %c0_14 = arith.constant 0 : index
    %c0_15 = arith.constant 0 : index
    %18 = vector.load %arg1[%c0_13, %c0_14, %c0_15] : memref<1x8x256xf32, #tpu.memory_space<vmem>>, vector<1x8x256xf32>
    %19 = vector.shape_cast %18 : vector<1x8x256xf32> to vector<8x256xf32>
    %20 = vector.broadcast %14 : vector<8x1xf32> to vector<8x256xf32>
    %21 = arith.mulf %19, %20 : vector<8x256xf32>
    %22 = vector.broadcast %17 : vector<8x1xf32> to vector<8x256xf32>
    %23 = arith.addf %21, %22 : vector<8x256xf32>
    %cst_16 = arith.constant 0.000000e+00 : f32
    %24 = vector.broadcast %cst_16 : f32 to vector<8x256xf32>
    %25 = arith.maximumf %23, %24 : vector<8x256xf32>
    %26 = vector.shape_cast %25 : vector<8x256xf32> to vector<1x8x256xf32>
    %c0_17 = arith.constant 0 : index
    %c0_18 = arith.constant 0 : index
    %c0_19 = arith.constant 0 : index
    %27 = vector.load %arg6[%c0_17, %c0_18, %c0_19] : memref<1x8x256xf32, #tpu.memory_space<vmem>>, vector<1x8x256xf32>
    tpu.vector_store %arg6[%c0_17, %c0_18, %c0_19], %26 {strides = array<i32>} : memref<1x8x256xf32, #tpu.memory_space<vmem>>, vector<1x8x256xf32>,
    return
  }
  func.func @transform_0(%arg0: i32) -> (i32, i32, i32) {
    %c0_i32 = arith.constant 0 : i32
    %c0_i32_0 = arith.constant 0 : i32
    %c0_i32_1 = arith.constant 0 : i32
    return %arg0, %c0_i32, %c0_i32_0 : i32, i32, i32
  }
  func.func @transform_1(%arg0: i32) -> (i32, i32, i32) {
    %c0_i32 = arith.constant 0 : i32
    %c0_i32_0 = arith.constant 0 : i32
    %c0_i32_1 = arith.constant 0 : i32
    %c0_i32_2 = arith.constant 0 : i32
    return %c0_i32, %c0_i32_0, %c0_i32_1 : i32, i32, i32
  }
  func.func @transform_2(%arg0: i32) -> (i32, i32, i32) {
    %c0_i32 = arith.constant 0 : i32
    %c0_i32_0 = arith.constant 0 : i32
    %c0_i32_1 = arith.constant 0 : i32
    %c0_i32_2 = arith.constant 0 : i32
    return %c0_i32, %c0_i32_0, %c0_i32_1 : i32, i32, i32
  }
  func.func @transform_3(%arg0: i32) -> (i32, i32) {
    %c0_i32 = arith.constant 0 : i32
    %c0_i32_0 = arith.constant 0 : i32
    %c0_i32_1 = arith.constant 0 : i32
    return %c0_i32, %c0_i32_0 : i32, i32
  }
  func.func @transform_4(%arg0: i32) -> (i32, i32) {
    %c0_i32 = arith.constant 0 : i32
    %c0_i32_0 = arith.constant 0 : i32
    %c0_i32_1 = arith.constant 0 : i32
    return %c0_i32, %c0_i32_0 : i32, i32
  }
  func.func @transform_5(%arg0: i32) -> (i32, i32, i32) {
    %c0_i32 = arith.constant 0 : i32
    %c0_i32_0 = arith.constant 0 : i32
    %c0_i32_1 = arith.constant 0 : i32
    return %arg0, %c0_i32, %c0_i32_0 : i32, i32, i32
  }
}

</mosaic_0001>

<llo_original>
// kernel: conv_bnr_forward.3
$region0: #{conv_bnr_forward.3}
  #allocation0 [shape = 'u32[]', space=smem, size = 0x4, offset = 0x4, fixed_abs, tag = 'smem constant byte address 0x4 - core index']
  #allocation1 [shape = 'u32[144,128]{1,0:T(1,128)}', space=vmem, size = 0x12000, scoped, tag = 'internal scratch']
  %s0 = inlined_call_operand.vmem [shape: f32[2,8,256], index: 0, kind: input, shape index: {}, may-alias: {0,5}]
  %s1 = inlined_call_operand.vmem [shape: f32[2,8,1], index: 1, kind: input, shape index: {}]
  %s2 = inlined_call_operand.vmem [shape: f32[2,8,1], index: 2, kind: input, shape index: {}]
  %s3 = inlined_call_operand.vmem [shape: f32[8,1], index: 3, kind: input, shape index: {}]
  %s4 = inlined_call_operand.vmem [shape: f32[8,1], index: 4, kind: input, shape index: {}]
  %s5 = inlined_call_operand.vmem [shape: f32[2,8,256], index: 5, kind: output, shape index: {}, may-alias: {0,5}]
  %s6 = sld [smem:[#allocation0]]
  $region53: #{conv_bnr_forward.3} parent=0
    _
  %s8 = ssub.s32 1, %s6
  %s9 = scalar_select 0, %s8, %s6
  loop: start=0, step=1, limit=4
  $region2: #{conv_bnr_forward.3} parent=0 // loop_pre_header
    _
  $region3: #{conv_bnr_forward.3} parent=0 // loop_header
    %s11 = sphi 0, %s15
    %p12 = scmp.ge.s32.totalorder %s11, 4
    %s21 = sphi 0, %s23
    %s24 = sphi 0, %s21
    %s25 = sphi 0, %s24
    %s41 = sphi 0, %s25
    %s45 = sphi 0, %s45
    %s47 = sphi 0, %s45
    %s48 = sphi 0, %s47
    %s62 = sphi 0, %s48
    %s66 = sphi 0, %s66
    %s68 = sphi 0, %s66
    %s69 = sphi 0, %s68
    %s83 = sphi 0, %s69
    %s87 = sphi 0, %s87
    %s89 = sphi 0, %s87
    %s90 = sphi 0, %s89
    %s104 = sphi 0, %s90
    %s108 = sphi 0, %s108
    %s110 = sphi 0, %s108
    %s111 = sphi 0, %s110
    %s125 = sphi 0, %s111
    %s131 = sphi 0, %s133
    %s134 = sphi 0, %s131
    %s135 = sphi 0, %s134
    %s151 = sphi 0, %s135
  $region4: #{conv_bnr_forward.3} parent=0 // loop_header_branch
    %14 = sbr.rel (%p12) target = $region8
  $region5: #{conv_bnr_forward.3} parent=0 // loop_body
    %s16 = ssub.s32 %s11, 1
    %s17 = ssub.s32 %s11, 2
    %s18 = sadd.s32 %s11, 1
    %s19 = ssub.s32 %s11, %s18
    %p20 = scmp.eq.s32.totalorder %s19, 0
    %s22 = sadd.s32 %s21, 1
    %s23 = scalar_select %p20, %s21, %s22
    %p26 = pneg %p20
    %p27 = scmp.eq.s32.totalorder %s11, 1
    %p28 = por %p26, %p27
    %p29 = scmp.ne.s32.totalorder %s21, %s24
    %p30 = scmp.eq.s32.totalorder %s11, 0
    %p31 = por %p29, %p30
    %p32 = scmp.ne.s32.totalorder %s21, %s24
    %p33 = scmp.eq.s32.totalorder %s16, 1
    %p34 = por %p32, %p33
    %p35 = scmp.ne.s32.totalorder %s24, %s25
    %p36 = scmp.eq.s32.totalorder %s16, 0
    %p37 = por %p35, %p36
    %p38 = scmp.ne.s32.totalorder %s24, %s25
    %p39 = scmp.eq.s32.totalorder %s17, 1
    %p40 = por %p38, %p39
    %p42 = scmp.ne.s32.totalorder %s25, %s41
    %p43 = scmp.eq.s32.totalorder %s17, 0
    %p44 = por %p42, %p43
    %s46 = sadd.s32 %s45, 1
    %p49 = scmp.eq.s32.totalorder %s11, 1
    %p50 = scmp.ne.s32.totalorder %s45, %s47
    %p51 = scmp.eq.s32.totalorder %s11, 0
    %p52 = por %p50, %p51
    %p53 = scmp.ne.s32.totalorder %s45, %s47
    %p54 = scmp.eq.s32.totalorder %s16, 1
    %p55 = por %p53, %p54
    %p56 = scmp.ne.s32.totalorder %s47, %s48
    %p57 = scmp.eq.s32.totalorder %s16, 0
    %p58 = por %p56, %p57
    %p59 = scmp.ne.s32.totalorder %s47, %s48
    %p60 = scmp.eq.s32.totalorder %s17, 1
    %p61 = por %p59, %p60
    %p63 = scmp.ne.s32.totalorder %s48, %s62
    %p64 = scmp.eq.s32.totalorder %s17, 0
    %p65 = por %p63, %p64
    %s67 = sadd.s32 %s66, 1
    %p70 = scmp.eq.s32.totalorder %s11, 1
    %p71 = scmp.ne.s32.totalorder %s66, %s68
    %p72 = scmp.eq.s32.totalorder %s11, 0
    %p73 = por %p71, %p72
    %p74 = scmp.ne.s32.totalorder %s66, %s68
    %p75 = scmp.eq.s32.totalorder %s16, 1
    %p76 = por %p74, %p75
    %p77 = scmp.ne.s32.totalorder %s68, %s69
    %p78 = scmp.eq.s32.totalorder %s16, 0
    %p79 = por %p77, %p78
    %p80 = scmp.ne.s32.totalorder %s68, %s69
    %p81 = scmp.eq.s32.totalorder %s17, 1
    %p82 = por %p80, %p81
    %p84 = scmp.ne.s32.totalorder %s69, %s83
    %p85 = scmp.eq.s32.totalorder %s17, 0
    %p86 = por %p84, %p85
    %s88 = sadd.s32 %s87, 1
    %p91 = scmp.eq.s32.totalorder %s11, 1
    %p92 = scmp.ne.s32.totalorder %s87, %s89
    %p93 = scmp.eq.s32.totalorder %s11, 0
    %p94 = por %p92, %p93
    %p95 = scmp.ne.s32.totalorder %s87, %s89
    %p96 = scmp.eq.s32.totalorder %s16, 1
    %p97 = por %p95, %p96
    %p98 = scmp.ne.s32.totalorder %s89, %s90
    %p99 = scmp.eq.s32.totalorder %s16, 0
    %p100 = por %p98, %p99
    %p101 = scmp.ne.s32.totalorder %s89, %s90
    %p102 = scmp.eq.s32.totalorder %s17, 1
    %p103 = por %p101, %p102
    %p105 = scmp.ne.s32.totalorder %s90, %s104
    %p106 = scmp.eq.s32.totalorder %s17, 0
    %p107 = por %p105, %p106
    %s109 = sadd.s32 %s108, 1
    %p112 = scmp.eq.s32.totalorder %s11, 1
    %p113 = scmp.ne.s32.totalorder %s108, %s110
    %p114 = scmp.eq.s32.totalorder %s11, 0
    %p115 = por %p113, %p114
    %p116 = scmp.ne.s32.totalorder %s108, %s110
    %p117 = scmp.eq.s32.totalorder %s16, 1
    %p118 = por %p116, %p117
    %p119 = scmp.ne.s32.totalorder %s110, %s111
    %p120 = scmp.eq.s32.totalorder %s16, 0
    %p121 = por %p119, %p120
    %p122 = scmp.ne.s32.totalorder %s110, %s111
    %p123 = scmp.eq.s32.totalorder %s17, 1
    %p124 = por %p122, %p123
    %p126 = scmp.ne.s32.totalorder %s111, %s125
    %p127 = scmp.eq.s32.totalorder %s17, 0
    %p128 = por %p126, %p127
    %s129 = ssub.s32 %s11, %s18
    %p130 = scmp.eq.s32.totalorder %s129, 0
    %s132 = sadd.s32 %s131, 1
    %s133 = scalar_select %p130, %s131, %s132
    %p136 = pneg %p130
    %p137 = scmp.eq.s32.totalorder %s11, 1
    %p138 = por %p136, %p137
    %p139 = scmp.ne.s32.totalorder %s131, %s134
    %p140 = scmp.eq.s32.totalorder %s11, 0
    %p141 = por %p139, %p140
    %p142 = scmp.ne.s32.totalorder %s131, %s134
    %p143 = scmp.eq.s32.totalorder %s16, 1
    %p144 = por %p142, %p143
    %p145 = scmp.ne.s32.totalorder %s134, %s135
    %p146 = scmp.eq.s32.totalorder %s16, 0
    %p147 = por %p145, %p146
    %p148 = scmp.ne.s32.totalorder %s134, %s135
    %p149 = scmp.eq.s32.totalorder %s17, 1
    %p150 = por %p148, %p149
    %p152 = scmp.ne.s32.totalorder %s135, %s151
    %p153 = scmp.eq.s32.totalorder %s17, 0
    %p154 = por %p152, %p153
    %p155 = scmp.le.s32.totalorder 1, %s11
    %p156 = scmp.lt.s32.totalorder %s11, 3
    %p157 = pnand %p155, %p156
    %p158 = pneg %p157
    // Predicated region
    $region9: #{conv_bnr_forward.3} parent=5 // pred_check
      _
    $region10: #{conv_bnr_forward.3} parent=5 // pred_check_branch
      %160 = sbr.rel (%p157) target = $region12
    $region11: #{conv_bnr_forward.3} parent=5 // pred_region
      %s161 = ssub.s32 %s11, 1
      // Predicated region
      $region13: #{conv_bnr_forward.3} parent=11 // pred_check
        %p162 = pneg %p58
      $region14: #{conv_bnr_forward.3} parent=11 // pred_check_branch
        %164 = sbr.rel (%p162) target = $region16
      $region15: #{conv_bnr_forward.3} parent=11 // pred_region
        _
      $region16: #{conv_bnr_forward.3} parent=11 // pred_fallthru
        _
      // Predicated region
      $region17: #{conv_bnr_forward.3} parent=11 // pred_check
        %p165 = pneg %p79
      $region18: #{conv_bnr_forward.3} parent=11 // pred_check_branch
        %167 = sbr.rel (%p165) target = $region20
      $region19: #{conv_bnr_forward.3} parent=11 // pred_region
        _
      $region20: #{conv_bnr_forward.3} parent=11 // pred_fallthru
        _
      // Predicated region
      $region21: #{conv_bnr_forward.3} parent=11 // pred_check
        %p168 = pneg %p100
      $region22: #{conv_bnr_forward.3} parent=11 // pred_check_branch
        %170 = sbr.rel (%p168) target = $region24
      $region23: #{conv_bnr_forward.3} parent=11 // pred_region
        _
      $region24: #{conv_bnr_forward.3} parent=11 // pred_fallthru
        _
      // Predicated region
      $region25: #{conv_bnr_forward.3} parent=11 // pred_check
        %p171 = pneg %p121
      $region26: #{conv_bnr_forward.3} parent=11 // pred_check_branch
        %173 = sbr.rel (%p171) target = $region28
      $region27: #{conv_bnr_forward.3} parent=11 // pred_region
        _
      $region28: #{conv_bnr_forward.3} parent=11 // pred_fallthru
        _
    $region12: #{conv_bnr_forward.3} parent=5 // pred_fallthru
      _
    %p174 = scmp.lt.s32.totalorder %s11, 2
    // Predicated region
    $region29: #{conv_bnr_forward.3} parent=5 // pred_check
      %p175 = pneg %p174
    $region30: #{conv_bnr_forward.3} parent=5 // pred_check_branch
      %177 = sbr.rel (%p175) target = $region32
    $region31: #{conv_bnr_forward.3} parent=5 // pred_region
      // Predicated region
      $region33: #{conv_bnr_forward.3} parent=31 // pred_check
        %p178 = pneg %p31
      $region34: #{conv_bnr_forward.3} parent=31 // pred_check_branch
        %180 = sbr.rel (%p178) target = $region36
      $region35: #{conv_bnr_forward.3} parent=31 // pred_region
        %p181 = scmp.lt.s32.totalorder %s11, 1
        %s182 = scalar_select %p181, %s11, 1
        %s183 = smul.addr %s182, 2
        %s184 = smul.addr %s183, 8
        %s185 = scalar_lea.vmem %s0, %s184
      $region36: #{conv_bnr_forward.3} parent=31 // pred_fallthru
        _
    $region32: #{conv_bnr_forward.3} parent=5 // pred_fallthru
      _
    %p186 = scmp.le.s32.totalorder 1, %s11
    %p187 = scmp.lt.s32.totalorder %s11, 3
    %p188 = pnand %p186, %p187
    %p189 = pneg %p188
    // Predicated region
    $region37: #{conv_bnr_forward.3} parent=5 // pred_check
      _
    $region38: #{conv_bnr_forward.3} parent=5 // pred_check_branch
      %191 = sbr.rel (%p188) target = $region40
    $region39: #{conv_bnr_forward.3} parent=5 // pred_region
      %s192 = ssub.s32 %s11, 1
      %p193 = scmp.lt.s32.totalorder %s16, 1
      %s194 = scalar_select %p193, %s16, 1
      %s195 = smul.addr %s194, 2
      %s196 = smul.addr %s195, 8
      %s197 = scalar_lea.vmem %s0, %s196
      %p198 = pneg %p37
      %p199 = pneg %p34
      %p200 = pneg %p58
      %p201 = pneg %p55
      %p202 = pneg %p79
      %p203 = pneg %p76
      %p204 = pneg %p100
      %p205 = pneg %p97
      %p206 = pneg %p121
      %p207 = pneg %p118
      %p208 = pneg %p147
      %p209 = pneg %p144
      %p210 = scmp.lt.s32.totalorder %s16, 1
      %s211 = scalar_select %p210, %s16, 1
      %s212 = smul.addr %s211, 2
      %s213 = smul.addr %s212, 8
      %s214 = scalar_lea.vmem %s5, %s213
      %p215 = scmp.lt.s32.totalorder %s16, 1
      %s216 = scalar_select %p215, %s16, 1
      %s217 = smul.addr %s216, 2
      %s218 = smul.addr %s217, 8
      %s219 = scalar_lea.vmem %s0, %s218
      %p220 = scmp.lt.s32.totalorder %s16, 1
      %s221 = scalar_select %p220, %s16, 1
      %s222 = smul.addr %s221, 2
      %s223 = smul.addr %s222, 8
      %s224 = scalar_lea.vmem %s5, %s223
      %v225 = vld [vmem:[%s1] sm:$0xff]
      %v226 = vld [vmem:[%s1 + $0x8] sm:$0xff]
      %vm227 = vcmask 7168
      %v228 = vsel %vm227, %v225, 0.0
      %v229 = vsel %vm227, %v226, 0.0
      %v230 = vadd.f32 %v228, %v229
      %v231 = vld [vmem:[%s2] sm:$0xff]
      %v232 = vld [vmem:[%s2 + $0x8] sm:$0xff]
      %v233 = vsel %vm227, %v231, 0.0
      %v234 = vsel %vm227, %v232, 0.0
      %v235 = vadd.f32 %v233, %v234
      %v236 = vmul.f32 %v230, 0.001953125
      %v237 = vmul.f32 %v235, 0.001953125
      %v238 = vmul.f32 %v236, %v236
      %v239 = vsub.f32 %v237, %v238
      %v240 = vadd.f32 %v239, 1e-05
      %v241 = vrsqrt.pop %v240
      %v242 = vld [vmem:[%s3] sm:$0xff]
      %v243 = vmul.f32 %v242, %v241
      %v244 = vld [vmem:[%s4] sm:$0xff]
      %v245 = vmul.f32 %v236, %v243
      %v246 = vsub.f32 %v244, %v245
      %v247 = vld [vmem:[%s219] sm:$0xff]
      %v248 = vld [vmem:[%s219 + $0x8] sm:$0xff]
      %250 = vset.pattern.permute.xlu0 0
      %251 = vperm.xlu0 %250, %v243
      %v252 = vpop.permute.xlu0 %251
      %v254 = vmul.f32 %v247, %v252
      %v255 = vmul.f32 %v248, %v252
      %257 = vset.pattern.permute.xlu0 0
      %258 = vperm.xlu0 %257, %v246
      %v259 = vpop.permute.xlu0 %258
      %v261 = vadd.f32 %v254, %v259
      %v262 = vadd.f32 %v255, %v259
      %v263 = vmax.f32 %v261, 0.0
      %v264 = vmax.f32 %v262, 0.0
      %265 = vst [vmem:[%s224] sm:$0xff] %v263
      %266 = vst [vmem:[%s224 + $0x8] sm:$0xff] %v264
      %p267 = scmp.lt.s32.totalorder %s16, 1
      %s268 = scalar_select %p267, %s16, 1
      %s269 = smul.addr %s268, 2
      %s270 = smul.addr %s269, 8
      %s271 = scalar_lea.vmem %s5, %s270
      // Predicated region
      $region41: #{conv_bnr_forward.3} parent=39 // pred_check
        %p272 = pneg %p144
      $region42: #{conv_bnr_forward.3} parent=39 // pred_check_branch
        %274 = sbr.rel (%p272) target = $region44
      $region43: #{conv_bnr_forward.3} parent=39 // pred_region
        _
      $region44: #{conv_bnr_forward.3} parent=39 // pred_fallthru
        _
    $region40: #{conv_bnr_forward.3} parent=5 // pred_fallthru
      _
    %p275 = scmp.le.s32.totalorder 2, %s11
    // Predicated region
    $region45: #{conv_bnr_forward.3} parent=5 // pred_check
      %p276 = pneg %p275
    $region46: #{conv_bnr_forward.3} parent=5 // pred_check_branch
      %278 = sbr.rel (%p276) target = $region48
    $region47: #{conv_bnr_forward.3} parent=5 // pred_region
      %s279 = ssub.s32 %s11, 2
      // Predicated region
      $region49: #{conv_bnr_forward.3} parent=47 // pred_check
        %p280 = pneg %p150
      $region50: #{conv_bnr_forward.3} parent=47 // pred_check_branch
        %282 = sbr.rel (%p280) target = $region52
      $region51: #{conv_bnr_forward.3} parent=47 // pred_region
        %p283 = scmp.lt.s32.totalorder %s17, 1
        %s284 = scalar_select %p283, %s17, 1
        %s285 = smul.addr %s284, 2
        %s286 = smul.addr %s285, 8
        %s287 = scalar_lea.vmem %s5, %s286
      $region52: #{conv_bnr_forward.3} parent=47 // pred_fallthru
        _
    $region48: #{conv_bnr_forward.3} parent=5 // pred_fallthru
      _
  $region6: #{conv_bnr_forward.3} parent=0 // loop_footer
    %s15 = sadd.s32 1, %s11
  $region7: #{conv_bnr_forward.3} parent=0 // loop_footer_branch
    %10 = sbr.rel target = $region3
  $region8: #{conv_bnr_forward.3} parent=0 // loop_exit
    _

// kernel: conv_bnr_forward.2
$region0: #{conv_bnr_forward.2}
  #allocation0 [shape = 'u32[]', space=smem, size = 0x4, offset = 0x4, fixed_abs, tag = 'smem constant byte address 0x4 - core index']
  #allocation1 [shape = 'u32[144,128]{1,0:T(1,128)}', space=vmem, size = 0x12000, scoped, tag = 'internal scratch']
  #allocation2 [shape = 'f32[18,18,4]{2,1,0:T(8,128)}', space=vmem, size = 0x36000, scoped, tag = 'scratch operand']
  %s0 = inlined_call_operand.vmem [shape: f32[2,16,16,4], index: 0, kind: input, shape index: {}]
  %s1 = inlined_call_operand.vmem [shape: f32[8,36], index: 1, kind: input, shape index: {}]
  %s2 = inlined_call_operand.vmem [shape: f32[2,8,256], index: 2, kind: output, shape index: {0}]
  %s3 = inlined_call_operand.vmem [shape: f32[2,8,1], index: 3, kind: output, shape index: {1}]
  %s4 = inlined_call_operand.vmem [shape: f32[2,8,1], index: 4, kind: output, shape index: {2}]
  %5 = xla_tuple %s2, %s3, %s4
  %s6 = sld [smem:[#allocation0]]
  $region57: #{conv_bnr_forward.2} parent=0
    _
  %s8 = ssub.s32 1, %s6
  %s9 = scalar_select 0, %s8, %s6
  loop: start=0, step=1, limit=4
  $region2: #{conv_bnr_forward.2} parent=0 // loop_pre_header
    _
  $region3: #{conv_bnr_forward.2} parent=0 // loop_header
    %s11 = sphi 0, %s15
    %p12 = scmp.ge.s32.totalorder %s11, 4
    %s21 = sphi 0, %s23
    %s24 = sphi 0, %s21
    %s25 = sphi 0, %s24
    %s41 = sphi 0, %s25
    %s45 = sphi 0, %s45
    %s47 = sphi 0, %s45
    %s48 = sphi 0, %s47
    %s62 = sphi 0, %s48
    %s68 = sphi 0, %s70
    %s71 = sphi 0, %s68
    %s72 = sphi 0, %s71
    %s88 = sphi 0, %s72
    %s94 = sphi 0, %s96
    %s97 = sphi 0, %s94
    %s98 = sphi 0, %s97
    %s114 = sphi 0, %s98
    %s120 = sphi 0, %s122
    %s123 = sphi 0, %s120
    %s124 = sphi 0, %s123
    %s140 = sphi 0, %s124
  $region4: #{conv_bnr_forward.2} parent=0 // loop_header_branch
    %14 = sbr.rel (%p12) target = $region8
  $region5: #{conv_bnr_forward.2} parent=0 // loop_body
    %s16 = ssub.s32 %s11, 1
    %s17 = ssub.s32 %s11, 2
    %s18 = sadd.s32 %s11, 1
    %s19 = ssub.s32 %s11, %s18
    %p20 = scmp.eq.s32.totalorder %s19, 0
    %s22 = sadd.s32 %s21, 1
    %s23 = scalar_select %p20, %s21, %s22
    %p26 = pneg %p20
    %p27 = scmp.eq.s32.totalorder %s11, 1
    %p28 = por %p26, %p27
    %p29 = scmp.ne.s32.totalorder %s21, %s24
    %p30 = scmp.eq.s32.totalorder %s11, 0
    %p31 = por %p29, %p30
    %p32 = scmp.ne.s32.totalorder %s21, %s24
    %p33 = scmp.eq.s32.totalorder %s16, 1
    %p34 = por %p32, %p33
    %p35 = scmp.ne.s32.totalorder %s24, %s25
    %p36 = scmp.eq.s32.totalorder %s16, 0
    %p37 = por %p35, %p36
    %p38 = scmp.ne.s32.totalorder %s24, %s25
    %p39 = scmp.eq.s32.totalorder %s17, 1
    %p40 = por %p38, %p39
    %p42 = scmp.ne.s32.totalorder %s25, %s41
    %p43 = scmp.eq.s32.totalorder %s17, 0
    %p44 = por %p42, %p43
    %s46 = sadd.s32 %s45, 1
    %p49 = scmp.eq.s32.totalorder %s11, 1
    %p50 = scmp.ne.s32.totalorder %s45, %s47
    %p51 = scmp.eq.s32.totalorder %s11, 0
    %p52 = por %p50, %p51
    %p53 = scmp.ne.s32.totalorder %s45, %s47
    %p54 = scmp.eq.s32.totalorder %s16, 1
    %p55 = por %p53, %p54
    %p56 = scmp.ne.s32.totalorder %s47, %s48
    %p57 = scmp.eq.s32.totalorder %s16, 0
    %p58 = por %p56, %p57
    %p59 = scmp.ne.s32.totalorder %s47, %s48
    %p60 = scmp.eq.s32.totalorder %s17, 1
    %p61 = por %p59, %p60
    %p63 = scmp.ne.s32.totalorder %s48, %s62
    %p64 = scmp.eq.s32.totalorder %s17, 0
    %p65 = por %p63, %p64
    %s66 = ssub.s32 %s11, %s18
    %p67 = scmp.eq.s32.totalorder %s66, 0
    %s69 = sadd.s32 %s68, 1
    %s70 = scalar_select %p67, %s68, %s69
    %p73 = pneg %p67
    %p74 = scmp.eq.s32.totalorder %s11, 1
    %p75 = por %p73, %p74
    %p76 = scmp.ne.s32.totalorder %s68, %s71
    %p77 = scmp.eq.s32.totalorder %s11, 0
    %p78 = por %p76, %p77
    %p79 = scmp.ne.s32.totalorder %s68, %s71
    %p80 = scmp.eq.s32.totalorder %s16, 1
    %p81 = por %p79, %p80
    %p82 = scmp.ne.s32.totalorder %s71, %s72
    %p83 = scmp.eq.s32.totalorder %s16, 0
    %p84 = por %p82, %p83
    %p85 = scmp.ne.s32.totalorder %s71, %s72
    %p86 = scmp.eq.s32.totalorder %s17, 1
    %p87 = por %p85, %p86
    %p89 = scmp.ne.s32.totalorder %s72, %s88
    %p90 = scmp.eq.s32.totalorder %s17, 0
    %p91 = por %p89, %p90
    %s92 = ssub.s32 %s11, %s18
    %p93 = scmp.eq.s32.totalorder %s92, 0
    %s95 = sadd.s32 %s94, 1
    %s96 = scalar_select %p93, %s94, %s95
    %p99 = pneg %p93
    %p100 = scmp.eq.s32.totalorder %s11, 1
    %p101 = por %p99, %p100
    %p102 = scmp.ne.s32.totalorder %s94, %s97
    %p103 = scmp.eq.s32.totalorder %s11, 0
    %p104 = por %p102, %p103
    %p105 = scmp.ne.s32.totalorder %s94, %s97
    %p106 = scmp.eq.s32.totalorder %s16, 1
    %p107 = por %p105, %p106
    %p108 = scmp.ne.s32.totalorder %s97, %s98
    %p109 = scmp.eq.s32.totalorder %s16, 0
    %p110 = por %p108, %p109
    %p111 = scmp.ne.s32.totalorder %s97, %s98
    %p112 = scmp.eq.s32.totalorder %s17, 1
    %p113 = por %p111, %p112
    %p115 = scmp.ne.s32.totalorder %s98, %s114
    %p116 = scmp.eq.s32.totalorder %s17, 0
    %p117 = por %p115, %p116
    %s118 = ssub.s32 %s11, %s18
    %p119 = scmp.eq.s32.totalorder %s118, 0
    %s121 = sadd.s32 %s120, 1
    %s122 = scalar_select %p119, %s120, %s121
    %p125 = pneg %p119
    %p126 = scmp.eq.s32.totalorder %s11, 1
    %p127 = por %p125, %p126
    %p128 = scmp.ne.s32.totalorder %s120, %s123
    %p129 = scmp.eq.s32.totalorder %s11, 0
    %p130 = por %p128, %p129
    %p131 = scmp.ne.s32.totalorder %s120, %s123
    %p132 = scmp.eq.s32.totalorder %s16, 1
    %p133 = por %p131, %p132
    %p134 = scmp.ne.s32.totalorder %s123, %s124
    %p135 = scmp.eq.s32.totalorder %s16, 0
    %p136 = por %p134, %p135
    %p137 = scmp.ne.s32.totalorder %s123, %s124
    %p138 = scmp.eq.s32.totalorder %s17, 1
    %p139 = por %p137, %p138
    %p141 = scmp.ne.s32.totalorder %s124, %s140
    %p142 = scmp.eq.s32.totalorder %s17, 0
    %p143 = por %p141, %p142
    %p144 = scmp.le.s32.totalorder 1, %s11
    %p145 = scmp.lt.s32.totalorder %s11, 3
    %p146 = pnand %p144, %p145
    %p147 = pneg %p146
    // Predicated region
    $region9: #{conv_bnr_forward.2} parent=5 // pred_check
      _
    $region10: #{conv_bnr_forward.2} parent=5 // pred_check_branch
      %149 = sbr.rel (%p146) target = $region12
    $region11: #{conv_bnr_forward.2} parent=5 // pred_region
      %s150 = ssub.s32 %s11, 1
      // Predicated region
      $region13: #{conv_bnr_forward.2} parent=11 // pred_check
        %p151 = pneg %p58
      $region14: #{conv_bnr_forward.2} parent=11 // pred_check_branch
        %153 = sbr.rel (%p151) target = $region16
      $region15: #{conv_bnr_forward.2} parent=11 // pred_region
        _
      $region16: #{conv_bnr_forward.2} parent=11 // pred_fallthru
        _
    $region12: #{conv_bnr_forward.2} parent=5 // pred_fallthru
      _
    %p154 = scmp.lt.s32.totalorder %s11, 2
    // Predicated region
    $region17: #{conv_bnr_forward.2} parent=5 // pred_check
      %p155 = pneg %p154
    $region18: #{conv_bnr_forward.2} parent=5 // pred_check_branch
      %157 = sbr.rel (%p155) target = $region20
    $region19: #{conv_bnr_forward.2} parent=5 // pred_region
      // Predicated region
      $region21: #{conv_bnr_forward.2} parent=19 // pred_check
        %p158 = pneg %p31
      $region22: #{conv_bnr_forward.2} parent=19 // pred_check_branch
        %160 = sbr.rel (%p158) target = $region24
      $region23: #{conv_bnr_forward.2} parent=19 // pred_region
        %p161 = scmp.lt.s32.totalorder %s11, 1
        %s162 = scalar_select %p161, %s11, 1
        %s163 = smul.addr %s162, 32
        %s164 = smul.addr %s163, 8
        %s165 = scalar_lea.vmem %s0, %s164
      $region24: #{conv_bnr_forward.2} parent=19 // pred_fallthru
        _
    $region20: #{conv_bnr_forward.2} parent=5 // pred_fallthru
      _
    %p166 = scmp.le.s32.totalorder 1, %s11
    %p167 = scmp.lt.s32.totalorder %s11, 3
    %p168 = pnand %p166, %p167
    %p169 = pneg %p168
    // Predicated region
    $region25: #{conv_bnr_forward.2} parent=5 // pred_check
      _
    $region26: #{conv_bnr_forward.2} parent=5 // pred_check_branch
      %171 = sbr.rel (%p168) target = $region28
    $region27: #{conv_bnr_forward.2} parent=5 // pred_region
      %s172 = ssub.s32 %s11, 1
      %p173 = scmp.lt.s32.totalorder %s16, 1
      %s174 = scalar_select %p173, %s16, 1
      %s175 = smul.addr %s174, 32
      %s176 = smul.addr %s175, 8
      %s177 = scalar_lea.vmem %s0, %s176
      %p178 = pneg %p37
      %p179 = pneg %p34
      %p180 = pneg %p58
      %p181 = pneg %p55
      %p182 = pneg %p84
      %p183 = pneg %p81
      %p184 = scmp.lt.s32.totalorder %s16, 1
      %s185 = scalar_select %p184, %s16, 1
      %s186 = smul.addr %s185, 2
      %s187 = smul.addr %s186, 8
      %s188 = scalar_lea.vmem %s2, %s187
      %p189 = pneg %p110
      %p190 = pneg %p107
      %p191 = scmp.lt.s32.totalorder %s16, 1
      %s192 = scalar_select %p191, %s16, 1
      %s193 = smul.addr %s192, 8
      %s194 = scalar_lea.vmem %s3, %s193
      %p195 = pneg %p136
      %p196 = pneg %p133
      %p197 = scmp.lt.s32.totalorder %s16, 1
      %s198 = scalar_select %p197, %s16, 1
      %s199 = smul.addr %s198, 8
      %s200 = scalar_lea.vmem %s4, %s199
      %p201 = scmp.lt.s32.totalorder %s16, 1
      %s202 = scalar_select %p201, %s16, 1
      %s203 = smul.addr %s202, 32
      %s204 = smul.addr %s203, 8
      %s205 = scalar_lea.vmem %s0, %s204
      %p206 = scmp.lt.s32.totalorder %s16, 1
      %s207 = scalar_select %p206, %s16, 1
      %s208 = smul.addr %s207, 2
      %s209 = smul.addr %s208, 8
      %s210 = scalar_lea.vmem %s2, %s209
      %p211 = scmp.lt.s32.totalorder %s16, 1
      %s212 = scalar_select %p211, %s16, 1
      %s213 = smul.addr %s212, 8
      %s214 = scalar_lea.vmem %s3, %s213
      %p215 = scmp.lt.s32.totalorder %s16, 1
      %s216 = scalar_select %p215, %s16, 1
      %s217 = smul.addr %s216, 8
      %s218 = scalar_lea.vmem %s4, %s217
      %vm219 = vcmask 31744
      %220 = vst.msk [vmem:[#allocation2] sm:$0xff] %vm219, 0.0
      %221 = vst.msk [vmem:[#allocation2 + $0x8] sm:$0xff] %vm219, 0.0
      %vm222 = vcmask 25600
      %223 = vst.msk [vmem:[#allocation2 + $0x10] sm:$0x3] %vm222, 0.0
      %224 = vst.msk [vmem:[#allocation2 + $0x18] sm:$0xff] %vm219, 0.0
      %225 = vst.msk [vmem:[#allocation2 + $0x20] sm:$0xff] %vm219, 0.0
      %226 = vst.msk [vmem:[#allocation2 + $0x28] sm:$0x3] %vm222, 0.0
      %227 = vst.msk [vmem:[#allocation2 + $0x30] sm:$0xff] %vm219, 0.0
      %228 = vst.msk [vmem:[#allocation2 + $0x38] sm:$0xff] %vm219, 0.0
      %229 = vst.msk [vmem:[#allocation2 + $0x40] sm:$0x3] %vm222, 0.0
      %230 = vst.msk [vmem:[#allocation2 + $0x48] sm:$0xff] %vm219, 0.0
      %231 = vst.msk [vmem:[#allocation2 + $0x50] sm:$0xff] %vm219, 0.0
      %232 = vst.msk [vmem:[#allocation2 + $0x58] sm:$0x3] %vm222, 0.0
      %233 = vst.msk [vmem:[#allocation2 + $0x60] sm:$0xff] %vm219, 0.0
      %234 = vst.msk [vmem:[#allocation2 + $0x68] sm:$0xff] %vm219, 0.0
      %235 = vst.msk [vmem:[#allocation2 + $0x70] sm:$0x3] %vm222, 0.0
      %236 = vst.msk [vmem:[#allocation2 + $0x78] sm:$0xff] %vm219, 0.0
      %237 = vst.msk [vmem:[#allocation2 + $0x80] sm:$0xff] %vm219, 0.0
      %238 = vst.msk [vmem:[#allocation2 + $0x88] sm:$0x3] %vm222, 0.0
      %239 = vst.msk [vmem:[#allocation2 + $0x90] sm:$0xff] %vm219, 0.0
      %240 = vst.msk [vmem:[#allocation2 + $0x98] sm:$0xff] %vm219, 0.0
      %241 = vst.msk [vmem:[#allocation2 + $0xa0] sm:$0x3] %vm222, 0.0
      %242 = vst.msk [vmem:[#allocation2 + $0xa8] sm:$0xff] %vm219, 0.0
      %243 = vst.msk [vmem:[#allocation2 + $0xb0] sm:$0xff] %vm219, 0.0
      %244 = vst.msk [vmem:[#allocation2 + $0xb8] sm:$0x3] %vm222, 0.0
      %245 = vst.msk [vmem:[#allocation2 + $0xc0] sm:$0xff] %vm219, 0.0
      %246 = vst.msk [vmem:[#allocation2 + $0xc8] sm:$0xff] %vm219, 0.0
      %247 = vst.msk [vmem:[#allocation2 + $0xd0] sm:$0x3] %vm222, 0.0
      %248 = vst.msk [vmem:[#allocation2 + $0xd8] sm:$0xff] %vm219, 0.0
      %249 = vst.msk [vmem:[#allocation2 + $0xe0] sm:$0xff] %vm219, 0.0
      %250 = vst.msk [vmem:[#allocation2 + $0xe8] sm:$0x3] %vm222, 0.0
      %251 = vst.msk [vmem:[#allocation2 + $0xf0] sm:$0xff] %vm219, 0.0
      %252 = vst.msk [vmem:[#allocation2 + $0xf8] sm:$0xff] %vm219, 0.0
      %253 = vst.msk [vmem:[#allocation2 + $0x100] sm:$0x3] %vm222, 0.0
      %254 = vst.msk [vmem:[#allocation2 + $0x108] sm:$0xff] %vm219, 0.0
      %255 = vst.msk [vmem:[#allocation2 + $0x110] sm:$0xff] %vm219, 0.0
      %256 = vst.msk [vmem:[#allocation2 + $0x118] sm:$0x3] %vm222, 0.0
      %257 = vst.msk [vmem:[#allocation2 + $0x120] sm:$0xff] %vm219, 0.0
      %258 = vst.msk [vmem:[#allocation2 + $0x128] sm:$0xff] %vm219, 0.0
      %259 = vst.msk [vmem:[#allocation2 + $0x130] sm:$0x3] %vm222, 0.0
      %260 = vst.msk [vmem:[#allocation2 + $0x138] sm:$0xff] %vm219, 0.0
      %261 = vst.msk [vmem:[#allocation2 + $0x140] sm:$0xff] %vm219, 0.0
      %262 = vst.msk [vmem:[#allocation2 + $0x148] sm:$0x3] %vm222, 0.0
      %263 = vst.msk [vmem:[#allocation2 + $0x150] sm:$0xff] %vm219, 0.0
      %264 = vst.msk [vmem:[#allocation2 + $0x158] sm:$0xff] %vm219, 0.0
      %265 = vst.msk [vmem:[#allocation2 + $0x160] sm:$0x3] %vm222, 0.0
      %266 = vst.msk [vmem:[#allocation2 + $0x168] sm:$0xff] %vm219, 0.0
      %267 = vst.msk [vmem:[#allocation2 + $0x170] sm:$0xff] %vm219, 0.0
      %268 = vst.msk [vmem:[#allocation2 + $0x178] sm:$0x3] %vm222, 0.0
      %269 = vst.msk [vmem:[#allocation2 + $0x180] sm:$0xff] %vm219, 0.0
      %270 = vst.msk [vmem:[#allocation2 + $0x188] sm:$0xff] %vm219, 0.0
      %271 = vst.msk [vmem:[#allocation2 + $0x190] sm:$0x3] %vm222, 0.0
      %272 = vst.msk [vmem:[#allocation2 + $0x198] sm:$0xff] %vm219, 0.0
      %273 = vst.msk [vmem:[#allocation2 + $0x1a0] sm:$0xff] %vm219, 0.0
      %274 = vst.msk [vmem:[#allocation2 + $0x1a8] sm:$0x3] %vm222, 0.0
      %v275 = vld [vmem:[%s205] sm:$0xff]
      %v276 = vld [vmem:[%s205 + $0x8] sm:$0xff]
      %v277 = vld [vmem:[%s205 + $0x10] sm:$0xff]
      %v278 = vld [vmem:[%s205 + $0x18] sm:$0xff]
      %v279 = vld [vmem:[%s205 + $0x20] sm:$0xff]
      %v280 = vld [vmem:[%s205 + $0x28] sm:$0xff]
      %v281 = vld [vmem:[%s205 + $0x30] sm:$0xff]
      %v282 = vld [vmem:[%s205 + $0x38] sm:$0xff]
      %v283 = vld [vmem:[%s205 + $0x40] sm:$0xff]
      %v284 = vld [vmem:[%s205 + $0x48] sm:$0xff]
      %v285 = vld [vmem:[%s205 + $0x50] sm:$0xff]
      %v286 = vld [vmem:[%s205 + $0x58] sm:$0xff]
      %v287 = vld [vmem:[%s205 + $0x60] sm:$0xff]
      %v288 = vld [vmem:[%s205 + $0x68] sm:$0xff]
      %v289 = vld [vmem:[%s205 + $0x70] sm:$0xff]
      %v290 = vld [vmem:[%s205 + $0x78] sm:$0xff]
      %v291 = vld [vmem:[%s205 + $0x80] sm:$0xff]
      %v292 = vld [vmem:[%s205 + $0x88] sm:$0xff]
      %v293 = vld [vmem:[%s205 + $0x90] sm:$0xff]
      %v294 = vld [vmem:[%s205 + $0x98] sm:$0xff]
      %v295 = vld [vmem:[%s205 + $0xa0] sm:$0xff]
      %v296 = vld [vmem:[%s205 + $0xa8] sm:$0xff]
      %v297 = vld [vmem:[%s205 + $0xb0] sm:$0xff]
      %v298 = vld [vmem:[%s205 + $0xb8] sm:$0xff]
      %v299 = vld [vmem:[%s205 + $0xc0] sm:$0xff]
      %v300 = vld [vmem:[%s205 + $0xc8] sm:$0xff]
      %v301 = vld [vmem:[%s205 + $0xd0] sm:$0xff]
      %v302 = vld [vmem:[%s205 + $0xd8] sm:$0xff]
      %v303 = vld [vmem:[%s205 + $0xe0] sm:$0xff]
      %v304 = vld [vmem:[%s205 + $0xe8] sm:$0xff]
      %v305 = vld [vmem:[%s205 + $0xf0] sm:$0xff]
      %v306 = vld [vmem:[%s205 + $0xf8] sm:$0xff]
      %s307 = scalar_lea.vmem [#allocation2], 24
      %308 = vst.msk [vmem:[%s307 + $0x1] sm:$0xff] %vm219, %v275
      %309 = vst.msk [vmem:[%s307 + $0x9] sm:$0xff] %vm219, %v276
      %310 = vst.msk [vmem:[%s307 + $0x19] sm:$0xff] %vm219, %v277
      %311 = vst.msk [vmem:[%s307 + $0x21] sm:$0xff] %vm219, %v278
      %312 = vst.msk [vmem:[%s307 + $0x31] sm:$0xff] %vm219, %v279
      %313 = vst.msk [vmem:[%s307 + $0x39] sm:$0xff] %vm219, %v280
      %314 = vst.msk [vmem:[%s307 + $0x49] sm:$0xff] %vm219, %v281
      %315 = vst.msk [vmem:[%s307 + $0x51] sm:$0xff] %vm219, %v282
      %316 = vst.msk [vmem:[%s307 + $0x61] sm:$0xff] %vm219, %v283
      %317 = vst.msk [vmem:[%s307 + $0x69] sm:$0xff] %vm219, %v284
      %318 = vst.msk [vmem:[%s307 + $0x79] sm:$0xff] %vm219, %v285
      %319 = vst.msk [vmem:[%s307 + $0x81] sm:$0xff] %vm219, %v286
      %320 = vst.msk [vmem:[%s307 + $0x91] sm:$0xff] %vm219, %v287
      %321 = vst.msk [vmem:[%s307 + $0x99] sm:$0xff] %vm219, %v288
      %322 = vst.msk [vmem:[%s307 + $0xa9] sm:$0xff] %vm219, %v289
      %323 = vst.msk [vmem:[%s307 + $0xb1] sm:$0xff] %vm219, %v290
      %324 = vst.msk [vmem:[%s307 + $0xc1] sm:$0xff] %vm219, %v291
      %325 = vst.msk [vmem:[%s307 + $0xc9] sm:$0xff] %vm219, %v292
      %326 = vst.msk [vmem:[%s307 + $0xd9] sm:$0xff] %vm219, %v293
      %327 = vst.msk [vmem:[%s307 + $0xe1] sm:$0xff] %vm219, %v294
      %328 = vst.msk [vmem:[%s307 + $0xf1] sm:$0xff] %vm219, %v295
      %329 = vst.msk [vmem:[%s307 + $0xf9] sm:$0xff] %vm219, %v296
      %330 = vst.msk [vmem:[%s307 + $0x109] sm:$0xff] %vm219, %v297
      %331 = vst.msk [vmem:[%s307 + $0x111] sm:$0xff] %vm219, %v298
      %332 = vst.msk [vmem:[%s307 + $0x121] sm:$0xff] %vm219, %v299
      %333 = vst.msk [vmem:[%s307 + $0x129] sm:$0xff] %vm219, %v300
      %334 = vst.msk [vmem:[%s307 + $0x139] sm:$0xff] %vm219, %v301
      %335 = vst.msk [vmem:[%s307 + $0x141] sm:$0xff] %vm219, %v302
      %336 = vst.msk [vmem:[%s307 + $0x151] sm:$0xff] %vm219, %v303
      %337 = vst.msk [vmem:[%s307 + $0x159] sm:$0xff] %vm219, %v304
      %338 = vst.msk [vmem:[%s307 + $0x169] sm:$0xff] %vm219, %v305
      %339 = vst.msk [vmem:[%s307 + $0x171] sm:$0xff] %vm219, %v306
      %v340 = vld [vmem:[#allocation2] sm:$0xff]
      %v341 = vld [vmem:[#allocation2 + $0x8] sm:$0xff]
      %v342 = vld [vmem:[#allocation2 + $0x18] sm:$0xff]
      %v343 = vld [vmem:[#allocation2 + $0x20] sm:$0xff]
      %v344 = vld [vmem:[#allocation2 + $0x30] sm:$0xff]
      %v345 = vld [vmem:[#allocation2 + $0x38] sm:$0xff]
      %v346 = vld [vmem:[#allocation2 + $0x48] sm:$0xff]
      %v347 = vld [vmem:[#allocation2 + $0x50] sm:$0xff]
      %v348 = vld [vmem:[#allocation2 + $0x60] sm:$0xff]
      %v349 = vld [vmem:[#allocation2 + $0x68] sm:$0xff]
      %v350 = vld [vmem:[#allocation2 + $0x78] sm:$0xff]
      %v351 = vld [vmem:[#allocation2 + $0x80] sm:$0xff]
      %v352 = vld [vmem:[#allocation2 + $0x90] sm:$0xff]
      %v353 = vld [vmem:[#allocation2 + $0x98] sm:$0xff]
      %v354 = vld [vmem:[#allocation2 + $0xa8] sm:$0xff]
      %v355 = vld [vmem:[#allocation2 + $0xb0] sm:$0xff]
      %v356 = vld [vmem:[#allocation2 + $0xc0] sm:$0xff]
      %v357 = vld [vmem:[#allocation2 + $0xc8] sm:$0xff]
      %v358 = vld [vmem:[#allocation2 + $0xd8] sm:$0xff]
      %v359 = vld [vmem:[#allocation2 + $0xe0] sm:$0xff]
      %v360 = vld [vmem:[#allocation2 + $0xf0] sm:$0xff]
      %v361 = vld [vmem:[#allocation2 + $0xf8] sm:$0xff]
      %v362 = vld [vmem:[#allocation2 + $0x108] sm:$0xff]
      %v363 = vld [vmem:[#allocation2 + $0x110] sm:$0xff]
      %v364 = vld [vmem:[#allocation2 + $0x120] sm:$0xff]
      %v365 = vld [vmem:[#allocation2 + $0x128] sm:$0xff]
      %v366 = vld [vmem:[#allocation2 + $0x138] sm:$0xff]
      %v367 = vld [vmem:[#allocation2 + $0x140] sm:$0xff]
      %v368 = vld [vmem:[#allocation2 + $0x150] sm:$0xff]
      %v369 = vld [vmem:[#allocation2 + $0x158] sm:$0xff]
      %v370 = vld [vmem:[#allocation2 + $0x168] sm:$0xff]
      %v371 = vld [vmem:[#allocation2 + $0x170] sm:$0xff]
      %v372 = vld [vmem:[#allocation2 + $0x1] sm:$0xff]
      %v373 = vld [vmem:[#allocation2 + $0x9] sm:$0xff]
      %v374 = vld [vmem:[#allocation2 + $0x19] sm:$0xff]
      %v375 = vld [vmem:[#allocation2 + $0x21] sm:$0xff]
      %v376 = vld [vmem:[#allocation2 + $0x31] sm:$0xff]
      %v377 = vld [vmem:[#allocation2 + $0x39] sm:$0xff]
      %v378 = vld [vmem:[#allocation2 + $0x49] sm:$0xff]
      %v379 = vld [vmem:[#allocation2 + $0x51] sm:$0xff]
      %v380 = vld [vmem:[#allocation2 + $0x61] sm:$0xff]
      %v381 = vld [vmem:[#allocation2 + $0x69] sm:$0xff]
      %v382 = vld [vmem:[#allocation2 + $0x79] sm:$0xff]
      %v383 = vld [vmem:[#allocation2 + $0x81] sm:$0xff]
      %v384 = vld [vmem:[#allocation2 + $0x91] sm:$0xff]
      %v385 = vld [vmem:[#allocation2 + $0x99] sm:$0xff]
      %v386 = vld [vmem:[#allocation2 + $0xa9] sm:$0xff]
      %v387 = vld [vmem:[#allocation2 + $0xb1] sm:$0xff]
      %v388 = vld [vmem:[#allocation2 + $0xc1] sm:$0xff]
      %v389 = vld [vmem:[#allocation2 + $0xc9] sm:$0xff]
      %v390 = vld [vmem:[#allocation2 + $0xd9] sm:$0xff]
      %v391 = vld [vmem:[#allocation2 + $0xe1] sm:$0xff]
      %v392 = vld [vmem:[#allocation2 + $0xf1] sm:$0xff]
      %v393 = vld [vmem:[#allocation2 + $0xf9] sm:$0xff]
      %v394 = vld [vmem:[#allocation2 + $0x109] sm:$0xff]
      %v395 = vld [vmem:[#allocation2 + $0x111] sm:$0xff]
      %v396 = vld [vmem:[#allocation2 + $0x121] sm:$0xff]
      %v397 = vld [vmem:[#allocation2 + $0x129] sm:$0xff]
      %v398 = vld [vmem:[#allocation2 + $0x139] sm:$0xff]
      %v399 = vld [vmem:[#allocation2 + $0x141] sm:$0xff]
      %v400 = vld [vmem:[#allocation2 + $0x151] sm:$0xff]
      %v401 = vld [vmem:[#allocation2 + $0x159] sm:$0xff]
      %v402 = vld [vmem:[#allocation2 + $0x169] sm:$0xff]
      %v403 = vld [vmem:[#allocation2 + $0x171] sm:$0xff]
      %v404 = vld [vmem:[#allocation2 + $0x2] sm:$0xff]
      %v405 = vld [vmem:[#allocation2 + $0xa] sm:$0xff]
      %v406 = vld [vmem:[#allocation2 + $0x1a] sm:$0xff]
      %v407 = vld [vmem:[#allocation2 + $0x22] sm:$0xff]
      %v408 = vld [vmem:[#allocation2 + $0x32] sm:$0xff]
      %v409 = vld [vmem:[#allocation2 + $0x3a] sm:$0xff]
      %v410 = vld [vmem:[#allocation2 + $0x4a] sm:$0xff]
      %v411 = vld [vmem:[#allocation2 + $0x52] sm:$0xff]
      %v412 = vld [vmem:[#allocation2 + $0x62] sm:$0xff]
      %v413 = vld [vmem:[#allocation2 + $0x6a] sm:$0xff]
      %v414 = vld [vmem:[#allocation2 + $0x7a] sm:$0xff]
      %v415 = vld [vmem:[#allocation2 + $0x82] sm:$0xff]
      %v416 = vld [vmem:[#allocation2 + $0x92] sm:$0xff]
      %v417 = vld [vmem:[#allocation2 + $0x9a] sm:$0xff]
      %v418 = vld [vmem:[#allocation2 + $0xaa] sm:$0xff]
      %v419 = vld [vmem:[#allocation2 + $0xb2] sm:$0xff]
      %v420 = vld [vmem:[#allocation2 + $0xc2] sm:$0xff]
      %v421 = vld [vmem:[#allocation2 + $0xca] sm:$0xff]
      %v422 = vld [vmem:[#allocation2 + $0xda] sm:$0xff]
      %v423 = vld [vmem:[#allocation2 + $0xe2] sm:$0xff]
      %v424 = vld [vmem:[#allocation2 + $0xf2] sm:$0xff]
      %v425 = vld [vmem:[#allocation2 + $0xfa] sm:$0xff]
      %v426 = vld [vmem:[#allocation2 + $0x10a] sm:$0xff]
      %v427 = vld [vmem:[#allocation2 + $0x112] sm:$0xff]
      %v428 = vld [vmem:[#allocation2 + $0x122] sm:$0xff]
      %v429 = vld [vmem:[#allocation2 + $0x12a] sm:$0xff]
      %v430 = vld [vmem:[#allocation2 + $0x13a] sm:$0xff]
      %v431 = vld [vmem:[#allocation2 + $0x142] sm:$0xff]
      %v432 = vld [vmem:[#allocation2 + $0x152] sm:$0xff]
      %v433 = vld [vmem:[#allocation2 + $0x15a] sm:$0xff]
      %v434 = vld [vmem:[#allocation2 + $0x16a] sm:$0xff]
      %v435 = vld [vmem:[#allocation2 + $0x172] sm:$0xff]
      %v436 = vld [vmem:[%s307] sm:$0xff]
      %v437 = vld [vmem:[%s307 + $0x8] sm:$0xff]
      %v438 = vld [vmem:[%s307 + $0x18] sm:$0xff]
      %v439 = vld [vmem:[%s307 + $0x20] sm:$0xff]
      %v440 = vld [vmem:[%s307 + $0x30] sm:$0xff]
      %v441 = vld [vmem:[%s307 + $0x38] sm:$0xff]
      %v442 = vld [vmem:[%s307 + $0x48] sm:$0xff]
      %v443 = vld [vmem:[%s307 + $0x50] sm:$0xff]
      %v444 = vld [vmem:[%s307 + $0x60] sm:$0xff]
      %v445 = vld [vmem:[%s307 + $0x68] sm:$0xff]
      %v446 = vld [vmem:[%s307 + $0x78] sm:$0xff]
      %v447 = vld [vmem:[%s307 + $0x80] sm:$0xff]
      %v448 = vld [vmem:[%s307 + $0x90] sm:$0xff]
      %v449 = vld [vmem:[%s307 + $0x98] sm:$0xff]
      %v450 = vld [vmem:[%s307 + $0xa8] sm:$0xff]
      %v451 = vld [vmem:[%s307 + $0xb0] sm:$0xff]
      %v452 = vld [vmem:[%s307 + $0xc0] sm:$0xff]
      %v453 = vld [vmem:[%s307 + $0xc8] sm:$0xff]
      %v454 = vld [vmem:[%s307 + $0xd8] sm:$0xff]
      %v455 = vld [vmem:[%s307 + $0xe0] sm:$0xff]
      %v456 = vld [vmem:[%s307 + $0xf0] sm:$0xff]
      %v457 = vld [vmem:[%s307 + $0xf8] sm:$0xff]
      %v458 = vld [vmem:[%s307 + $0x108] sm:$0xff]
      %v459 = vld [vmem:[%s307 + $0x110] sm:$0xff]
      %v460 = vld [vmem:[%s307 + $0x120] sm:$0xff]
      %v461 = vld [vmem:[%s307 + $0x128] sm:$0xff]
      %v462 = vld [vmem:[%s307 + $0x138] sm:$0xff]
      %v463 = vld [vmem:[%s307 + $0x140] sm:$0xff]
      %v464 = vld [vmem:[%s307 + $0x150] sm:$0xff]
      %v465 = vld [vmem:[%s307 + $0x158] sm:$0xff]
      %v466 = vld [vmem:[%s307 + $0x168] sm:$0xff]
      %v467 = vld [vmem:[%s307 + $0x170] sm:$0xff]
      %v468 = vld [vmem:[%s307 + $0x1] sm:$0xff]
      %v469 = vld [vmem:[%s307 + $0x9] sm:$0xff]
      %v470 = vld [vmem:[%s307 + $0x19] sm:$0xff]
      %v471 = vld [vmem:[%s307 + $0x21] sm:$0xff]
      %v472 = vld [vmem:[%s307 + $0x31] sm:$0xff]
      %v473 = vld [vmem:[%s307 + $0x39] sm:$0xff]
      %v474 = vld [vmem:[%s307 + $0x49] sm:$0xff]
      %v475 = vld [vmem:[%s307 + $0x51] sm:$0xff]
      %v476 = vld [vmem:[%s307 + $0x61] sm:$0xff]
      %v477 = vld [vmem:[%s307 + $0x69] sm:$0xff]
      %v478 = vld [vmem:[%s307 + $0x79] sm:$0xff]
      %v479 = vld [vmem:[%s307 + $0x81] sm:$0xff]
      %v480 = vld [vmem:[%s307 + $0x91] sm:$0xff]
      %v481 = vld [vmem:[%s307 + $0x99] sm:$0xff]
      %v482 = vld [vmem:[%s307 + $0xa9] sm:$0xff]
      %v483 = vld [vmem:[%s307 + $0xb1] sm:$0xff]
      %v484 = vld [vmem:[%s307 + $0xc1] sm:$0xff]
      %v485 = vld [vmem:[%s307 + $0xc9] sm:$0xff]
      %v486 = vld [vmem:[%s307 + $0xd9] sm:$0xff]
      %v487 = vld [vmem:[%s307 + $0xe1] sm:$0xff]
      %v488 = vld [vmem:[%s307 + $0xf1] sm:$0xff]
      %v489 = vld [vmem:[%s307 + $0xf9] sm:$0xff]
      %v490 = vld [vmem:[%s307 + $0x109] sm:$0xff]
      %v491 = vld [vmem:[%s307 + $0x111] sm:$0xff]
      %v492 = vld [vmem:[%s307 + $0x121] sm:$0xff]
      %v493 = vld [vmem:[%s307 + $0x129] sm:$0xff]
      %v494 = vld [vmem:[%s307 + $0x139] sm:$0xff]
      %v495 = vld [vmem:[%s307 + $0x141] sm:$0xff]
      %v496 = vld [vmem:[%s307 + $0x151] sm:$0xff]
      %v497 = vld [vmem:[%s307 + $0x159] sm:$0xff]
      %v498 = vld [vmem:[%s307 + $0x169] sm:$0xff]
      %v499 = vld [vmem:[%s307 + $0x171] sm:$0xff]
      %v500 = vld [vmem:[%s307 + $0x2] sm:$0xff]
      %v501 = vld [vmem:[%s307 + $0xa] sm:$0xff]
      %v502 = vld [vmem:[%s307 + $0x1a] sm:$0xff]
      %v503 = vld [vmem:[%s307 + $0x22] sm:$0xff]
      %v504 = vld [vmem:[%s307 + $0x32] sm:$0xff]
      %v505 = vld [vmem:[%s307 + $0x3a] sm:$0xff]
      %v506 = vld [vmem:[%s307 + $0x4a] sm:$0xff]
      %v507 = vld [vmem:[%s307 + $0x52] sm:$0xff]
      %v508 = vld [vmem:[%s307 + $0x62] sm:$0xff]
      %v509 = vld [vmem:[%s307 + $0x6a] sm:$0xff]
      %v510 = vld [vmem:[%s307 + $0x7a] sm:$0xff]
      %v511 = vld [vmem:[%s307 + $0x82] sm:$0xff]
      %v512 = vld [vmem:[%s307 + $0x92] sm:$0xff]
      %v513 = vld [vmem:[%s307 + $0x9a] sm:$0xff]
      %v514 = vld [vmem:[%s307 + $0xaa] sm:$0xff]
      %v515 = vld [vmem:[%s307 + $0xb2] sm:$0xff]
      %v516 = vld [vmem:[%s307 + $0xc2] sm:$0xff]
      %v517 = vld [vmem:[%s307 + $0xca] sm:$0xff]
      %v518 = vld [vmem:[%s307 + $0xda] sm:$0xff]
      %v519 = vld [vmem:[%s307 + $0xe2] sm:$0xff]
      %v520 = vld [vmem:[%s307 + $0xf2] sm:$0xff]
      %v521 = vld [vmem:[%s307 + $0xfa] sm:$0xff]
      %v522 = vld [vmem:[%s307 + $0x10a] sm:$0xff]
      %v523 = vld [vmem:[%s307 + $0x112] sm:$0xff]
      %v524 = vld [vmem:[%s307 + $0x122] sm:$0xff]
      %v525 = vld [vmem:[%s307 + $0x12a] sm:$0xff]
      %v526 = vld [vmem:[%s307 + $0x13a] sm:$0xff]
      %v527 = vld [vmem:[%s307 + $0x142] sm:$0xff]
      %v528 = vld [vmem:[%s307 + $0x152] sm:$0xff]
      %v529 = vld [vmem:[%s307 + $0x15a] sm:$0xff]
      %v530 = vld [vmem:[%s307 + $0x16a] sm:$0xff]
      %v531 = vld [vmem:[%s307 + $0x172] sm:$0xff]
      %s532 = scalar_lea.vmem [#allocation2], 48
      %v533 = vld [vmem:[%s532] sm:$0xff]
      %v534 = vld [vmem:[%s532 + $0x8] sm:$0xff]
      %v535 = vld [vmem:[%s532 + $0x18] sm:$0xff]
      %v536 = vld [vmem:[%s532 + $0x20] sm:$0xff]
      %v537 = vld [vmem:[%s532 + $0x30] sm:$0xff]
      %v538 = vld [vmem:[%s532 + $0x38] sm:$0xff]
      %v539 = vld [vmem:[%s532 + $0x48] sm:$0xff]
      %v540 = vld [vmem:[%s532 + $0x50] sm:$0xff]
      %v541 = vld [vmem:[%s532 + $0x60] sm:$0xff]
      %v542 = vld [vmem:[%s532 + $0x68] sm:$0xff]
      %v543 = vld [vmem:[%s532 + $0x78] sm:$0xff]
      %v544 = vld [vmem:[%s532 + $0x80] sm:$0xff]
      %v545 = vld [vmem:[%s532 + $0x90] sm:$0xff]
      %v546 = vld [vmem:[%s532 + $0x98] sm:$0xff]
      %v547 = vld [vmem:[%s532 + $0xa8] sm:$0xff]
      %v548 = vld [vmem:[%s532 + $0xb0] sm:$0xff]
      %v549 = vld [vmem:[%s532 + $0xc0] sm:$0xff]
      %v550 = vld [vmem:[%s532 + $0xc8] sm:$0xff]
      %v551 = vld [vmem:[%s532 + $0xd8] sm:$0xff]
      %v552 = vld [vmem:[%s532 + $0xe0] sm:$0xff]
      %v553 = vld [vmem:[%s532 + $0xf0] sm:$0xff]
      %v554 = vld [vmem:[%s532 + $0xf8] sm:$0xff]
      %v555 = vld [vmem:[%s532 + $0x108] sm:$0xff]
      %v556 = vld [vmem:[%s532 + $0x110] sm:$0xff]
      %v557 = vld [vmem:[%s532 + $0x120] sm:$0xff]
      %v558 = vld [vmem:[%s532 + $0x128] sm:$0xff]
      %v559 = vld [vmem:[%s532 + $0x138] sm:$0xff]
      %v560 = vld [vmem:[%s532 + $0x140] sm:$0xff]
      %v561 = vld [vmem:[%s532 + $0x150] sm:$0xff]
      %v562 = vld [vmem:[%s532 + $0x158] sm:$0xff]
      %v563 = vld [vmem:[%s532 + $0x168] sm:$0xff]
      %v564 = vld [vmem:[%s532 + $0x170] sm:$0xff]
      %v565 = vld [vmem:[%s532 + $0x1] sm:$0xff]
      %v566 = vld [vmem:[%s532 + $0x9] sm:$0xff]
      %v567 = vld [vmem:[%s532 + $0x19] sm:$0xff]
      %v568 = vld [vmem:[%s532 + $0x21] sm:$0xff]
      %v569 = vld [vmem:[%s532 + $0x31] sm:$0xff]
      %v570 = vld [vmem:[%s532 + $0x39] sm:$0xff]
      %v571 = vld [vmem:[%s532 + $0x49] sm:$0xff]
      %v572 = vld [vmem:[%s532 + $0x51] sm:$0xff]
      %v573 = vld [vmem:[%s532 + $0x61] sm:$0xff]
      %v574 = vld [vmem:[%s532 + $0x69] sm:$0xff]
      %v575 = vld [vmem:[%s532 + $0x79] sm:$0xff]
      %v576 = vld [vmem:[%s532 + $0x81] sm:$0xff]
      %v577 = vld [vmem:[%s532 + $0x91] sm:$0xff]
      %v578 = vld [vmem:[%s532 + $0x99] sm:$0xff]
      %v579 = vld [vmem:[%s532 + $0xa9] sm:$0xff]
      %v580 = vld [vmem:[%s532 + $0xb1] sm:$0xff]
      %v581 = vld [vmem:[%s532 + $0xc1] sm:$0xff]
      %v582 = vld [vmem:[%s532 + $0xc9] sm:$0xff]
      %v583 = vld [vmem:[%s532 + $0xd9] sm:$0xff]
      %v584 = vld [vmem:[%s532 + $0xe1] sm:$0xff]
      %v585 = vld [vmem:[%s532 + $0xf1] sm:$0xff]
      %v586 = vld [vmem:[%s532 + $0xf9] sm:$0xff]
      %v587 = vld [vmem:[%s532 + $0x109] sm:$0xff]
      %v588 = vld [vmem:[%s532 + $0x111] sm:$0xff]
      %v589 = vld [vmem:[%s532 + $0x121] sm:$0xff]
      %v590 = vld [vmem:[%s532 + $0x129] sm:$0xff]
      %v591 = vld [vmem:[%s532 + $0x139] sm:$0xff]
      %v592 = vld [vmem:[%s532 + $0x141] sm:$0xff]
      %v593 = vld [vmem:[%s532 + $0x151] sm:$0xff]
      %v594 = vld [vmem:[%s532 + $0x159] sm:$0xff]
      %v595 = vld [vmem:[%s532 + $0x169] sm:$0xff]
      %v596 = vld [vmem:[%s532 + $0x171] sm:$0xff]
      %v597 = vld [vmem:[%s532 + $0x2] sm:$0xff]
      %v598 = vld [vmem:[%s532 + $0xa] sm:$0xff]
      %v599 = vld [vmem:[%s532 + $0x1a] sm:$0xff]
      %v600 = vld [vmem:[%s532 + $0x22] sm:$0xff]
      %v601 = vld [vmem:[%s532 + $0x32] sm:$0xff]
      %v602 = vld [vmem:[%s532 + $0x3a] sm:$0xff]
      %v603 = vld [vmem:[%s532 + $0x4a] sm:$0xff]
      %v604 = vld [vmem:[%s532 + $0x52] sm:$0xff]
      %v605 = vld [vmem:[%s532 + $0x62] sm:$0xff]
      %v606 = vld [vmem:[%s532 + $0x6a] sm:$0xff]
      %v607 = vld [vmem:[%s532 + $0x7a] sm:$0xff]
      %v608 = vld [vmem:[%s532 + $0x82] sm:$0xff]
      %v609 = vld [vmem:[%s532 + $0x92] sm:$0xff]
      %v610 = vld [vmem:[%s532 + $0x9a] sm:$0xff]
      %v611 = vld [vmem:[%s532 + $0xaa] sm:$0xff]
      %v612 = vld [vmem:[%s532 + $0xb2] sm:$0xff]
      %v613 = vld [vmem:[%s532 + $0xc2] sm:$0xff]
      %v614 = vld [vmem:[%s532 + $0xca] sm:$0xff]
      %v615 = vld [vmem:[%s532 + $0xda] sm:$0xff]
      %v616 = vld [vmem:[%s532 + $0xe2] sm:$0xff]
      %v617 = vld [vmem:[%s532 + $0xf2] sm:$0xff]
      %v618 = vld [vmem:[%s532 + $0xfa] sm:$0xff]
      %v619 = vld [vmem:[%s532 + $0x10a] sm:$0xff]
      %v620 = vld [vmem:[%s532 + $0x112] sm:$0xff]
      %v621 = vld [vmem:[%s532 + $0x122] sm:$0xff]
      %v622 = vld [vmem:[%s532 + $0x12a] sm:$0xff]
      %v623 = vld [vmem:[%s532 + $0x13a] sm:$0xff]
      %v624 = vld [vmem:[%s532 + $0x142] sm:$0xff]
      %v625 = vld [vmem:[%s532 + $0x152] sm:$0xff]
      %v626 = vld [vmem:[%s532 + $0x15a] sm:$0xff]
      %v627 = vld [vmem:[%s532 + $0x16a] sm:$0xff]
      %v628 = vld [vmem:[%s532 + $0x172] sm:$0xff]
      %661 = vrot.lane.b32.xlu0 %v372, 4
      %v662 = vpop.permute.xlu0 %661
      %663 = vrot.lane.b32.xlu0 %v373, 4
      %v664 = vpop.permute.xlu0 %663
      %665 = vrot.lane.b32.xlu0 %v374, 4
      %v666 = vpop.permute.xlu0 %665
      %667 = vrot.lane.b32.xlu0 %v375, 4
      %v668 = vpop.permute.xlu0 %667
      %669 = vrot.lane.b32.xlu0 %v376, 4
      %v670 = vpop.permute.xlu0 %669
      %671 = vrot.lane.b32.xlu0 %v377, 4
      %v672 = vpop.permute.xlu0 %671
      %673 = vrot.lane.b32.xlu0 %v378, 4
      %v674 = vpop.permute.xlu0 %673
      %675 = vrot.lane.b32.xlu0 %v379, 4
      %v676 = vpop.permute.xlu0 %675
      %677 = vrot.lane.b32.xlu0 %v380, 4
      %v678 = vpop.permute.xlu0 %677
      %679 = vrot.lane.b32.xlu0 %v381, 4
      %v680 = vpop.permute.xlu0 %679
      %681 = vrot.lane.b32.xlu0 %v382, 4
      %v682 = vpop.permute.xlu0 %681
      %683 = vrot.lane.b32.xlu0 %v383, 4
      %v684 = vpop.permute.xlu0 %683
      %685 = vrot.lane.b32.xlu0 %v384, 4
      %v686 = vpop.permute.xlu0 %685
      %687 = vrot.lane.b32.xlu0 %v385, 4
      %v688 = vpop.permute.xlu0 %687
      %689 = vrot.lane.b32.xlu0 %v386, 4
      %v690 = vpop.permute.xlu0 %689
      %691 = vrot.lane.b32.xlu0 %v387, 4
      %v692 = vpop.permute.xlu0 %691
      %693 = vrot.lane.b32.xlu0 %v388, 4
      %v694 = vpop.permute.xlu0 %693
      %695 = vrot.lane.b32.xlu0 %v389, 4
      %v696 = vpop.permute.xlu0 %695
      %697 = vrot.lane.b32.xlu0 %v390, 4
      %v698 = vpop.permute.xlu0 %697
      %699 = vrot.lane.b32.xlu0 %v391, 4
      %v700 = vpop.permute.xlu0 %699
      %701 = vrot.lane.b32.xlu0 %v392, 4
      %v702 = vpop.permute.xlu0 %701
      %703 = vrot.lane.b32.xlu0 %v393, 4
      %v704 = vpop.permute.xlu0 %703
      %705 = vrot.lane.b32.xlu0 %v394, 4
      %v706 = vpop.permute.xlu0 %705
      %707 = vrot.lane.b32.xlu0 %v395, 4
      %v708 = vpop.permute.xlu0 %707
      %709 = vrot.lane.b32.xlu0 %v396, 4
      %v710 = vpop.permute.xlu0 %709
      %711 = vrot.lane.b32.xlu0 %v397, 4
      %v712 = vpop.permute.xlu0 %711
      %713 = vrot.lane.b32.xlu0 %v398, 4
      %v714 = vpop.permute.xlu0 %713
      %715 = vrot.lane.b32.xlu0 %v399, 4
      %v716 = vpop.permute.xlu0 %715
      %717 = vrot.lane.b32.xlu0 %v400, 4
      %v718 = vpop.permute.xlu0 %717
      %719 = vrot.lane.b32.xlu0 %v401, 4
      %v720 = vpop.permute.xlu0 %719
      %721 = vrot.lane.b32.xlu0 %v402, 4
      %v722 = vpop.permute.xlu0 %721
      %723 = vrot.lane.b32.xlu0 %v403, 4
      %v724 = vpop.permute.xlu0 %723
      %789 = vrot.lane.b32.xlu0 %v404, 8
      %v790 = vpop.permute.xlu0 %789
      %791 = vrot.lane.b32.xlu0 %v405, 8
      %v792 = vpop.permute.xlu0 %791
      %793 = vrot.lane.b32.xlu0 %v406, 8
      %v794 = vpop.permute.xlu0 %793
      %795 = vrot.lane.b32.xlu0 %v407, 8
      %v796 = vpop.permute.xlu0 %795
      %797 = vrot.lane.b32.xlu0 %v408, 8
      %v798 = vpop.permute.xlu0 %797
      %799 = vrot.lane.b32.xlu0 %v409, 8
      %v800 = vpop.permute.xlu0 %799
      %801 = vrot.lane.b32.xlu0 %v410, 8
      %v802 = vpop.permute.xlu0 %801
      %803 = vrot.lane.b32.xlu0 %v411, 8
      %v804 = vpop.permute.xlu0 %803
      %805 = vrot.lane.b32.xlu0 %v412, 8
      %v806 = vpop.permute.xlu0 %805
      %807 = vrot.lane.b32.xlu0 %v413, 8
      %v808 = vpop.permute.xlu0 %807
      %809 = vrot.lane.b32.xlu0 %v414, 8
      %v810 = vpop.permute.xlu0 %809
      %811 = vrot.lane.b32.xlu0 %v415, 8
      %v812 = vpop.permute.xlu0 %811
      %813 = vrot.lane.b32.xlu0 %v416, 8
      %v814 = vpop.permute.xlu0 %813
      %815 = vrot.lane.b32.xlu0 %v417, 8
      %v816 = vpop.permute.xlu0 %815
      %817 = vrot.lane.b32.xlu0 %v418, 8
      %v818 = vpop.permute.xlu0 %817
      %819 = vrot.lane.b32.xlu0 %v419, 8
      %v820 = vpop.permute.xlu0 %819
      %821 = vrot.lane.b32.xlu0 %v420, 8
      %v822 = vpop.permute.xlu0 %821
      %823 = vrot.lane.b32.xlu0 %v421, 8
      %v824 = vpop.permute.xlu0 %823
      %825 = vrot.lane.b32.xlu0 %v422, 8
      %v826 = vpop.permute.xlu0 %825
      %827 = vrot.lane.b32.xlu0 %v423, 8
      %v828 = vpop.permute.xlu0 %827
      %829 = vrot.lane.b32.xlu0 %v424, 8
      %v830 = vpop.permute.xlu0 %829
      %831 = vrot.lane.b32.xlu0 %v425, 8
      %v832 = vpop.permute.xlu0 %831
      %833 = vrot.lane.b32.xlu0 %v426, 8
      %v834 = vpop.permute.xlu0 %833
      %835 = vrot.lane.b32.xlu0 %v427, 8
      %v836 = vpop.permute.xlu0 %835
      %837 = vrot.lane.b32.xlu0 %v428, 8
      %v838 = vpop.permute.xlu0 %837
      %839 = vrot.lane.b32.xlu0 %v429, 8
      %v840 = vpop.permute.xlu0 %839
      %841 = vrot.lane.b32.xlu0 %v430, 8
      %v842 = vpop.permute.xlu0 %841
      %843 = vrot.lane.b32.xlu0 %v431, 8
      %v844 = vpop.permute.xlu0 %843
      %845 = vrot.lane.b32.xlu0 %v432, 8
      %v846 = vpop.permute.xlu0 %845
      %847 = vrot.lane.b32.xlu0 %v433, 8
      %v848 = vpop.permute.xlu0 %847
      %849 = vrot.lane.b32.xlu0 %v434, 8
      %v850 = vpop.permute.xlu0 %849
      %851 = vrot.lane.b32.xlu0 %v435, 8
      %v852 = vpop.permute.xlu0 %851
      %917 = vrot.lane.b32.xlu0 %v436, 12
      %v918 = vpop.permute.xlu0 %917
      %919 = vrot.lane.b32.xlu0 %v437, 12
      %v920 = vpop.permute.xlu0 %919
      %921 = vrot.lane.b32.xlu0 %v438, 12
      %v922 = vpop.permute.xlu0 %921
      %923 = vrot.lane.b32.xlu0 %v439, 12
      %v924 = vpop.permute.xlu0 %923
      %925 = vrot.lane.b32.xlu0 %v440, 12
      %v926 = vpop.permute.xlu0 %925
      %927 = vrot.lane.b32.xlu0 %v441, 12
      %v928 = vpop.permute.xlu0 %927
      %929 = vrot.lane.b32.xlu0 %v442, 12
      %v930 = vpop.permute.xlu0 %929
      %931 = vrot.lane.b32.xlu0 %v443, 12
      %v932 = vpop.permute.xlu0 %931
      %933 = vrot.lane.b32.xlu0 %v444, 12
      %v934 = vpop.permute.xlu0 %933
      %935 = vrot.lane.b32.xlu0 %v445, 12
      %v936 = vpop.permute.xlu0 %935
      %937 = vrot.lane.b32.xlu0 %v446, 12
      %v938 = vpop.permute.xlu0 %937
      %939 = vrot.lane.b32.xlu0 %v447, 12
      %v940 = vpop.permute.xlu0 %939
      %941 = vrot.lane.b32.xlu0 %v448, 12
      %v942 = vpop.permute.xlu0 %941
      %943 = vrot.lane.b32.xlu0 %v449, 12
      %v944 = vpop.permute.xlu0 %943
      %945 = vrot.lane.b32.xlu0 %v450, 12
      %v946 = vpop.permute.xlu0 %945
      %947 = vrot.lane.b32.xlu0 %v451, 12
      %v948 = vpop.permute.xlu0 %947
      %949 = vrot.lane.b32.xlu0 %v452, 12
      %v950 = vpop.permute.xlu0 %949
      %951 = vrot.lane.b32.xlu0 %v453, 12
      %v952 = vpop.permute.xlu0 %951
      %953 = vrot.lane.b32.xlu0 %v454, 12
      %v954 = vpop.permute.xlu0 %953
      %955 = vrot.lane.b32.xlu0 %v455, 12
      %v956 = vpop.permute.xlu0 %955
      %957 = vrot.lane.b32.xlu0 %v456, 12
      %v958 = vpop.permute.xlu0 %957
      %959 = vrot.lane.b32.xlu0 %v457, 12
      %v960 = vpop.permute.xlu0 %959
      %961 = vrot.lane.b32.xlu0 %v458, 12
      %v962 = vpop.permute.xlu0 %961
      %963 = vrot.lane.b32.xlu0 %v459, 12
      %v964 = vpop.permute.xlu0 %963
      %965 = vrot.lane.b32.xlu0 %v460, 12
      %v966 = vpop.permute.xlu0 %965
      %967 = vrot.lane.b32.xlu0 %v461, 12
      %v968 = vpop.permute.xlu0 %967
      %969 = vrot.lane.b32.xlu0 %v462, 12
      %v970 = vpop.permute.xlu0 %969
      %971 = vrot.lane.b32.xlu0 %v463, 12
      %v972 = vpop.permute.xlu0 %971
      %973 = vrot.lane.b32.xlu0 %v464, 12
      %v974 = vpop.permute.xlu0 %973
      %975 = vrot.lane.b32.xlu0 %v465, 12
      %v976 = vpop.permute.xlu0 %975
      %977 = vrot.lane.b32.xlu0 %v466, 12
      %v978 = vpop.permute.xlu0 %977
      %979 = vrot.lane.b32.xlu0 %v467, 12
      %v980 = vpop.permute.xlu0 %979
      %1045 = vrot.lane.b32.xlu0 %v468, 16
      %v1046 = vpop.permute.xlu0 %1045
      %1047 = vrot.lane.b32.xlu0 %v469, 16
      %v1048 = vpop.permute.xlu0 %1047
      %1049 = vrot.lane.b32.xlu0 %v470, 16
      %v1050 = vpop.permute.xlu0 %1049
      %1051 = vrot.lane.b32.xlu0 %v471, 16
      %v1052 = vpop.permute.xlu0 %1051
      %1053 = vrot.lane.b32.xlu0 %v472, 16
      %v1054 = vpop.permute.xlu0 %1053
      %1055 = vrot.lane.b32.xlu0 %v473, 16
      %v1056 = vpop.permute.xlu0 %1055
      %1057 = vrot.lane.b32.xlu0 %v474, 16
      %v1058 = vpop.permute.xlu0 %1057
      %1059 = vrot.lane.b32.xlu0 %v475, 16
      %v1060 = vpop.permute.xlu0 %1059
      %1061 = vrot.lane.b32.xlu0 %v476, 16
      %v1062 = vpop.permute.xlu0 %1061
      %1063 = vrot.lane.b32.xlu0 %v477, 16
      %v1064 = vpop.permute.xlu0 %1063
      %1065 = vrot.lane.b32.xlu0 %v478, 16
      %v1066 = vpop.permute.xlu0 %1065
      %1067 = vrot.lane.b32.xlu0 %v479, 16
      %v1068 = vpop.permute.xlu0 %1067
      %1069 = vrot.lane.b32.xlu0 %v480, 16
      %v1070 = vpop.permute.xlu0 %1069
      %1071 = vrot.lane.b32.xlu0 %v481, 16
      %v1072 = vpop.permute.xlu0 %1071
      %1073 = vrot.lane.b32.xlu0 %v482, 16
      %v1074 = vpop.permute.xlu0 %1073
      %1075 = vrot.lane.b32.xlu0 %v483, 16
      %v1076 = vpop.permute.xlu0 %1075
      %1077 = vrot.lane.b32.xlu0 %v484, 16
      %v1078 = vpop.permute.xlu0 %1077
      %1079 = vrot.lane.b32.xlu0 %v485, 16
      %v1080 = vpop.permute.xlu0 %1079
      %1081 = vrot.lane.b32.xlu0 %v486, 16
      %v1082 = vpop.permute.xlu0 %1081
      %1083 = vrot.lane.b32.xlu0 %v487, 16
      %v1084 = vpop.permute.xlu0 %1083
      %1085 = vrot.lane.b32.xlu0 %v488, 16
      %v1086 = vpop.permute.xlu0 %1085
      %1087 = vrot.lane.b32.xlu0 %v489, 16
      %v1088 = vpop.permute.xlu0 %1087
      %1089 = vrot.lane.b32.xlu0 %v490, 16
      %v1090 = vpop.permute.xlu0 %1089
      %1091 = vrot.lane.b32.xlu0 %v491, 16
      %v1092 = vpop.permute.xlu0 %1091
      %1093 = vrot.lane.b32.xlu0 %v492, 16
      %v1094 = vpop.permute.xlu0 %1093
      %1095 = vrot.lane.b32.xlu0 %v493, 16
      %v1096 = vpop.permute.xlu0 %1095
      %1097 = vrot.lane.b32.xlu0 %v494, 16
      %v1098 = vpop.permute.xlu0 %1097
      %1099 = vrot.lane.b32.xlu0 %v495, 16
      %v1100 = vpop.permute.xlu0 %1099
      %1101 = vrot.lane.b32.xlu0 %v496, 16
      %v1102 = vpop.permute.xlu0 %1101
      %1103 = vrot.lane.b32.xlu0 %v497, 16
      %v1104 = vpop.permute.xlu0 %1103
      %1105 = vrot.lane.b32.xlu0 %v498, 16
      %v1106 = vpop.permute.xlu0 %1105
      %1107 = vrot.lane.b32.xlu0 %v499, 16
      %v1108 = vpop.permute.xlu0 %1107
      %1173 = vrot.lane.b32.xlu0 %v500, 20
      %v1174 = vpop.permute.xlu0 %1173
      %1175 = vrot.lane.b32.xlu0 %v501, 20
      %v1176 = vpop.permute.xlu0 %1175
      %1177 = vrot.lane.b32.xlu0 %v502, 20
      %v1178 = vpop.permute.xlu0 %1177
      %1179 = vrot.lane.b32.xlu0 %v503, 20
      %v1180 = vpop.permute.xlu0 %1179
      %1181 = vrot.lane.b32.xlu0 %v504, 20
      %v1182 = vpop.permute.xlu0 %1181
      %1183 = vrot.lane.b32.xlu0 %v505, 20
      %v1184 = vpop.permute.xlu0 %1183
      %1185 = vrot.lane.b32.xlu0 %v506, 20
      %v1186 = vpop.permute.xlu0 %1185
      %1187 = vrot.lane.b32.xlu0 %v507, 20
      %v1188 = vpop.permute.xlu0 %1187
      %1189 = vrot.lane.b32.xlu0 %v508, 20
      %v1190 = vpop.permute.xlu0 %1189
      %1191 = vrot.lane.b32.xlu0 %v509, 20
      %v1192 = vpop.permute.xlu0 %1191
      %1193 = vrot.lane.b32.xlu0 %v510, 20
      %v1194 = vpop.permute.xlu0 %1193
      %1195 = vrot.lane.b32.xlu0 %v511, 20
      %v1196 = vpop.permute.xlu0 %1195
      %1197 = vrot.lane.b32.xlu0 %v512, 20
      %v1198 = vpop.permute.xlu0 %1197
      %1199 = vrot.lane.b32.xlu0 %v513, 20
      %v1200 = vpop.permute.xlu0 %1199
      %1201 = vrot.lane.b32.xlu0 %v514, 20
      %v1202 = vpop.permute.xlu0 %1201
      %1203 = vrot.lane.b32.xlu0 %v515, 20
      %v1204 = vpop.permute.xlu0 %1203
      %1205 = vrot.lane.b32.xlu0 %v516, 20
      %v1206 = vpop.permute.xlu0 %1205
      %1207 = vrot.lane.b32.xlu0 %v517, 20
      %v1208 = vpop.permute.xlu0 %1207
      %1209 = vrot.lane.b32.xlu0 %v518, 20
      %v1210 = vpop.permute.xlu0 %1209
      %1211 = vrot.lane.b32.xlu0 %v519, 20
      %v1212 = vpop.permute.xlu0 %1211
      %1213 = vrot.lane.b32.xlu0 %v520, 20
      %v1214 = vpop.permute.xlu0 %1213
      %1215 = vrot.lane.b32.xlu0 %v521, 20
      %v1216 = vpop.permute.xlu0 %1215
      %1217 = vrot.lane.b32.xlu0 %v522, 20
      %v1218 = vpop.permute.xlu0 %1217
      %1219 = vrot.lane.b32.xlu0 %v523, 20
      %v1220 = vpop.permute.xlu0 %1219
      %1221 = vrot.lane.b32.xlu0 %v524, 20
      %v1222 = vpop.permute.xlu0 %1221
      %1223 = vrot.lane.b32.xlu0 %v525, 20
      %v1224 = vpop.permute.xlu0 %1223
      %1225 = vrot.lane.b32.xlu0 %v526, 20
      %v1226 = vpop.permute.xlu0 %1225
      %1227 = vrot.lane.b32.xlu0 %v527, 20
      %v1228 = vpop.permute.xlu0 %1227
      %1229 = vrot.lane.b32.xlu0 %v528, 20
      %v1230 = vpop.permute.xlu0 %1229
      %1231 = vrot.lane.b32.xlu0 %v529, 20
      %v1232 = vpop.permute.xlu0 %1231
      %1233 = vrot.lane.b32.xlu0 %v530, 20
      %v1234 = vpop.permute.xlu0 %1233
      %1235 = vrot.lane.b32.xlu0 %v531, 20
      %v1236 = vpop.permute.xlu0 %1235
      %1301 = vrot.lane.b32.xlu0 %v533, 24
      %v1302 = vpop.permute.xlu0 %1301
      %1303 = vrot.lane.b32.xlu0 %v534, 24
      %v1304 = vpop.permute.xlu0 %1303
      %1305 = vrot.lane.b32.xlu0 %v535, 24
      %v1306 = vpop.permute.xlu0 %1305
      %1307 = vrot.lane.b32.xlu0 %v536, 24
      %v1308 = vpop.permute.xlu0 %1307
      %1309 = vrot.lane.b32.xlu0 %v537, 24
      %v1310 = vpop.permute.xlu0 %1309
      %1311 = vrot.lane.b32.xlu0 %v538, 24
      %v1312 = vpop.permute.xlu0 %1311
      %1313 = vrot.lane.b32.xlu0 %v539, 24
      %v1314 = vpop.permute.xlu0 %1313
      %1315 = vrot.lane.b32.xlu0 %v540, 24
      %v1316 = vpop.permute.xlu0 %1315
      %1317 = vrot.lane.b32.xlu0 %v541, 24
      %v1318 = vpop.permute.xlu0 %1317
      %1319 = vrot.lane.b32.xlu0 %v542, 24
      %v1320 = vpop.permute.xlu0 %1319
      %1321 = vrot.lane.b32.xlu0 %v543, 24
      %v1322 = vpop.permute.xlu0 %1321
      %1323 = vrot.lane.b32.xlu0 %v544, 24
      %v1324 = vpop.permute.xlu0 %1323
      %1325 = vrot.lane.b32.xlu0 %v545, 24
      %v1326 = vpop.permute.xlu0 %1325
      %1327 = vrot.lane.b32.xlu0 %v546, 24
      %v1328 = vpop.permute.xlu0 %1327
      %1329 = vrot.lane.b32.xlu0 %v547, 24
      %v1330 = vpop.permute.xlu0 %1329
      %1331 = vrot.lane.b32.xlu0 %v548, 24
      %v1332 = vpop.permute.xlu0 %1331
      %1333 = vrot.lane.b32.xlu0 %v549, 24
      %v1334 = vpop.permute.xlu0 %1333
      %1335 = vrot.lane.b32.xlu0 %v550, 24
      %v1336 = vpop.permute.xlu0 %1335
      %1337 = vrot.lane.b32.xlu0 %v551, 24
      %v1338 = vpop.permute.xlu0 %1337
      %1339 = vrot.lane.b32.xlu0 %v552, 24
      %v1340 = vpop.permute.xlu0 %1339
      %1341 = vrot.lane.b32.xlu0 %v553, 24
      %v1342 = vpop.permute.xlu0 %1341
      %1343 = vrot.lane.b32.xlu0 %v554, 24
      %v1344 = vpop.permute.xlu0 %1343
      %1345 = vrot.lane.b32.xlu0 %v555, 24
      %v1346 = vpop.permute.xlu0 %1345
      %1347 = vrot.lane.b32.xlu0 %v556, 24
      %v1348 = vpop.permute.xlu0 %1347
      %1349 = vrot.lane.b32.xlu0 %v557, 24
      %v1350 = vpop.permute.xlu0 %1349
      %1351 = vrot.lane.b32.xlu0 %v558, 24
      %v1352 = vpop.permute.xlu0 %1351
      %1353 = vrot.lane.b32.xlu0 %v559, 24
      %v1354 = vpop.permute.xlu0 %1353
      %1355 = vrot.lane.b32.xlu0 %v560, 24
      %v1356 = vpop.permute.xlu0 %1355
      %1357 = vrot.lane.b32.xlu0 %v561, 24
      %v1358 = vpop.permute.xlu0 %1357
      %1359 = vrot.lane.b32.xlu0 %v562, 24
      %v1360 = vpop.permute.xlu0 %1359
      %1361 = vrot.lane.b32.xlu0 %v563, 24
      %v1362 = vpop.permute.xlu0 %1361
      %1363 = vrot.lane.b32.xlu0 %v564, 24
      %v1364 = vpop.permute.xlu0 %1363
      %1429 = vrot.lane.b32.xlu0 %v565, 28
      %v1430 = vpop.permute.xlu0 %1429
      %1431 = vrot.lane.b32.xlu0 %v566, 28
      %v1432 = vpop.permute.xlu0 %1431
      %1433 = vrot.lane.b32.xlu0 %v567, 28
      %v1434 = vpop.permute.xlu0 %1433
      %1435 = vrot.lane.b32.xlu0 %v568, 28
      %v1436 = vpop.permute.xlu0 %1435
      %1437 = vrot.lane.b32.xlu0 %v569, 28
      %v1438 = vpop.permute.xlu0 %1437
      %1439 = vrot.lane.b32.xlu0 %v570, 28
      %v1440 = vpop.permute.xlu0 %1439
      %1441 = vrot.lane.b32.xlu0 %v571, 28
      %v1442 = vpop.permute.xlu0 %1441
      %1443 = vrot.lane.b32.xlu0 %v572, 28
      %v1444 = vpop.permute.xlu0 %1443
      %1445 = vrot.lane.b32.xlu0 %v573, 28
      %v1446 = vpop.permute.xlu0 %1445
      %1447 = vrot.lane.b32.xlu0 %v574, 28
      %v1448 = vpop.permute.xlu0 %1447
      %1449 = vrot.lane.b32.xlu0 %v575, 28
      %v1450 = vpop.permute.xlu0 %1449
      %1451 = vrot.lane.b32.xlu0 %v576, 28
      %v1452 = vpop.permute.xlu0 %1451
      %1453 = vrot.lane.b32.xlu0 %v577, 28
      %v1454 = vpop.permute.xlu0 %1453
      %1455 = vrot.lane.b32.xlu0 %v578, 28
      %v1456 = vpop.permute.xlu0 %1455
      %1457 = vrot.lane.b32.xlu0 %v579, 28
      %v1458 = vpop.permute.xlu0 %1457
      %1459 = vrot.lane.b32.xlu0 %v580, 28
      %v1460 = vpop.permute.xlu0 %1459
      %1461 = vrot.lane.b32.xlu0 %v581, 28
      %v1462 = vpop.permute.xlu0 %1461
      %1463 = vrot.lane.b32.xlu0 %v582, 28
      %v1464 = vpop.permute.xlu0 %1463
      %1465 = vrot.lane.b32.xlu0 %v583, 28
      %v1466 = vpop.permute.xlu0 %1465
      %1467 = vrot.lane.b32.xlu0 %v584, 28
      %v1468 = vpop.permute.xlu0 %1467
      %1469 = vrot.lane.b32.xlu0 %v585, 28
      %v1470 = vpop.permute.xlu0 %1469
      %1471 = vrot.lane.b32.xlu0 %v586, 28
      %v1472 = vpop.permute.xlu0 %1471
      %1473 = vrot.lane.b32.xlu0 %v587, 28
      %v1474 = vpop.permute.xlu0 %1473
      %1475 = vrot.lane.b32.xlu0 %v588, 28
      %v1476 = vpop.permute.xlu0 %1475
      %1477 = vrot.lane.b32.xlu0 %v589, 28
      %v1478 = vpop.permute.xlu0 %1477
      %1479 = vrot.lane.b32.xlu0 %v590, 28
      %v1480 = vpop.permute.xlu0 %1479
      %1481 = vrot.lane.b32.xlu0 %v591, 28
      %v1482 = vpop.permute.xlu0 %1481
      %1483 = vrot.lane.b32.xlu0 %v592, 28
      %v1484 = vpop.permute.xlu0 %1483
      %1485 = vrot.lane.b32.xlu0 %v593, 28
      %v1486 = vpop.permute.xlu0 %1485
      %1487 = vrot.lane.b32.xlu0 %v594, 28
      %v1488 = vpop.permute.xlu0 %1487
      %1489 = vrot.lane.b32.xlu0 %v595, 28
      %v1490 = vpop.permute.xlu0 %1489
      %1491 = vrot.lane.b32.xlu0 %v596, 28
      %v1492 = vpop.permute.xlu0 %1491
      %1557 = vrot.lane.b32.xlu0 %v597, 32
      %v1558 = vpop.permute.xlu0 %1557
      %1559 = vrot.lane.b32.xlu0 %v598, 32
      %v1560 = vpop.permute.xlu0 %1559
      %1561 = vrot.lane.b32.xlu0 %v599, 32
      %v1562 = vpop.permute.xlu0 %1561
      %1563 = vrot.lane.b32.xlu0 %v600, 32
      %v1564 = vpop.permute.xlu0 %1563
      %1565 = vrot.lane.b32.xlu0 %v601, 32
      %v1566 = vpop.permute.xlu0 %1565
      %1567 = vrot.lane.b32.xlu0 %v602, 32
      %v1568 = vpop.permute.xlu0 %1567
      %1569 = vrot.lane.b32.xlu0 %v603, 32
      %v1570 = vpop.permute.xlu0 %1569
      %1571 = vrot.lane.b32.xlu0 %v604, 32
      %v1572 = vpop.permute.xlu0 %1571
      %1573 = vrot.lane.b32.xlu0 %v605, 32
      %v1574 = vpop.permute.xlu0 %1573
      %1575 = vrot.lane.b32.xlu0 %v606, 32
      %v1576 = vpop.permute.xlu0 %1575
      %1577 = vrot.lane.b32.xlu0 %v607, 32
      %v1578 = vpop.permute.xlu0 %1577
      %1579 = vrot.lane.b32.xlu0 %v608, 32
      %v1580 = vpop.permute.xlu0 %1579
      %1581 = vrot.lane.b32.xlu0 %v609, 32
      %v1582 = vpop.permute.xlu0 %1581
      %1583 = vrot.lane.b32.xlu0 %v610, 32
      %v1584 = vpop.permute.xlu0 %1583
      %1585 = vrot.lane.b32.xlu0 %v611, 32
      %v1586 = vpop.permute.xlu0 %1585
      %1587 = vrot.lane.b32.xlu0 %v612, 32
      %v1588 = vpop.permute.xlu0 %1587
      %1589 = vrot.lane.b32.xlu0 %v613, 32
      %v1590 = vpop.permute.xlu0 %1589
      %1591 = vrot.lane.b32.xlu0 %v614, 32
      %v1592 = vpop.permute.xlu0 %1591
      %1593 = vrot.lane.b32.xlu0 %v615, 32
      %v1594 = vpop.permute.xlu0 %1593
      %1595 = vrot.lane.b32.xlu0 %v616, 32
      %v1596 = vpop.permute.xlu0 %1595
      %1597 = vrot.lane.b32.xlu0 %v617, 32
      %v1598 = vpop.permute.xlu0 %1597
      %1599 = vrot.lane.b32.xlu0 %v618, 32
      %v1600 = vpop.permute.xlu0 %1599
      %1601 = vrot.lane.b32.xlu0 %v619, 32
      %v1602 = vpop.permute.xlu0 %1601
      %1603 = vrot.lane.b32.xlu0 %v620, 32
      %v1604 = vpop.permute.xlu0 %1603
      %1605 = vrot.lane.b32.xlu0 %v621, 32
      %v1606 = vpop.permute.xlu0 %1605
      %1607 = vrot.lane.b32.xlu0 %v622, 32
      %v1608 = vpop.permute.xlu0 %1607
      %1609 = vrot.lane.b32.xlu0 %v623, 32
      %v1610 = vpop.permute.xlu0 %1609
      %1611 = vrot.lane.b32.xlu0 %v624, 32
      %v1612 = vpop.permute.xlu0 %1611
      %1613 = vrot.lane.b32.xlu0 %v625, 32
      %v1614 = vpop.permute.xlu0 %1613
      %1615 = vrot.lane.b32.xlu0 %v626, 32
      %v1616 = vpop.permute.xlu0 %1615
      %1617 = vrot.lane.b32.xlu0 %v627, 32
      %v1618 = vpop.permute.xlu0 %1617
      %1619 = vrot.lane.b32.xlu0 %v628, 32
      %v1620 = vpop.permute.xlu0 %1619
      %v1653 = vsel %vm219, %v340, %v662
      %v1654 = vsel %vm219, %v341, %v664
      %v1655 = vsel %vm219, %v342, %v666
      %v1656 = vsel %vm219, %v343, %v668
      %v1657 = vsel %vm219, %v344, %v670
      %v1658 = vsel %vm219, %v345, %v672
      %v1659 = vsel %vm219, %v346, %v674
      %v1660 = vsel %vm219, %v347, %v676
      %v1661 = vsel %vm219, %v348, %v678
      %v1662 = vsel %vm219, %v349, %v680
      %v1663 = vsel %vm219, %v350, %v682
      %v1664 = vsel %vm219, %v351, %v684
      %v1665 = vsel %vm219, %v352, %v686
      %v1666 = vsel %vm219, %v353, %v688
      %v1667 = vsel %vm219, %v354, %v690
      %v1668 = vsel %vm219, %v355, %v692
      %v1669 = vsel %vm219, %v356, %v694
      %v1670 = vsel %vm219, %v357, %v696
      %v1671 = vsel %vm219, %v358, %v698
      %v1672 = vsel %vm219, %v359, %v700
      %v1673 = vsel %vm219, %v360, %v702
      %v1674 = vsel %vm219, %v361, %v704
      %v1675 = vsel %vm219, %v362, %v706
      %v1676 = vsel %vm219, %v363, %v708
      %v1677 = vsel %vm219, %v364, %v710
      %v1678 = vsel %vm219, %v365, %v712
      %v1679 = vsel %vm219, %v366, %v714
      %v1680 = vsel %vm219, %v367, %v716
      %v1681 = vsel %vm219, %v368, %v718
      %v1682 = vsel %vm219, %v369, %v720
      %v1683 = vsel %vm219, %v370, %v722
      %v1684 = vsel %vm219, %v371, %v724
      %vm1685 = vcmask 64512
      %v1686 = vsel %vm1685, %v1653, %v790
      %v1687 = vsel %vm1685, %v1654, %v792
      %v1688 = vsel %vm1685, %v1655, %v794
      %v1689 = vsel %vm1685, %v1656, %v796
      %v1690 = vsel %vm1685, %v1657, %v798
      %v1691 = vsel %vm1685, %v1658, %v800
      %v1692 = vsel %vm1685, %v1659, %v802
      %v1693 = vsel %vm1685, %v1660, %v804
      %v1694 = vsel %vm1685, %v1661, %v806
      %v1695 = vsel %vm1685, %v1662, %v808
      %v1696 = vsel %vm1685, %v1663, %v810
      %v1697 = vsel %vm1685, %v1664, %v812
      %v1698 = vsel %vm1685, %v1665, %v814
      %v1699 = vsel %vm1685, %v1666, %v816
      %v1700 = vsel %vm1685, %v1667, %v818
      %v1701 = vsel %vm1685, %v1668, %v820
      %v1702 = vsel %vm1685, %v1669, %v822
      %v1703 = vsel %vm1685, %v1670, %v824
      %v1704 = vsel %vm1685, %v1671, %v826
      %v1705 = vsel %vm1685, %v1672, %v828
      %v1706 = vsel %vm1685, %v1673, %v830
      %v1707 = vsel %vm1685, %v1674, %v832
      %v1708 = vsel %vm1685, %v1675, %v834
      %v1709 = vsel %vm1685, %v1676, %v836
      %v1710 = vsel %vm1685, %v1677, %v838
      %v1711 = vsel %vm1685, %v1678, %v840
      %v1712 = vsel %vm1685, %v1679, %v842
      %v1713 = vsel %vm1685, %v1680, %v844
      %v1714 = vsel %vm1685, %v1681, %v846
      %v1715 = vsel %vm1685, %v1682, %v848
      %v1716 = vsel %vm1685, %v1683, %v850
      %v1717 = vsel %vm1685, %v1684, %v852
      %vm1718 = vcmask 97280
      %v1719 = vsel %vm1718, %v1686, %v918
      %v1720 = vsel %vm1718, %v1687, %v920
      %v1721 = vsel %vm1718, %v1688, %v922
      %v1722 = vsel %vm1718, %v1689, %v924
      %v1723 = vsel %vm1718, %v1690, %v926
      %v1724 = vsel %vm1718, %v1691, %v928
      %v1725 = vsel %vm1718, %v1692, %v930
      %v1726 = vsel %vm1718, %v1693, %v932
      %v1727 = vsel %vm1718, %v1694, %v934
      %v1728 = vsel %vm1718, %v1695, %v936
      %v1729 = vsel %vm1718, %v1696, %v938
      %v1730 = vsel %vm1718, %v1697, %v940
      %v1731 = vsel %vm1718, %v1698, %v942
      %v1732 = vsel %vm1718, %v1699, %v944
      %v1733 = vsel %vm1718, %v1700, %v946
      %v1734 = vsel %vm1718, %v1701, %v948
      %v1735 = vsel %vm1718, %v1702, %v950
      %v1736 = vsel %vm1718, %v1703, %v952
      %v1737 = vsel %vm1718, %v1704, %v954
      %v1738 = vsel %vm1718, %v1705, %v956
      %v1739 = vsel %vm1718, %v1706, %v958
      %v1740 = vsel %vm1718, %v1707, %v960
      %v1741 = vsel %vm1718, %v1708, %v962
      %v1742 = vsel %vm1718, %v1709, %v964
      %v1743 = vsel %vm1718, %v1710, %v966
      %v1744 = vsel %vm1718, %v1711, %v968
      %v1745 = vsel %vm1718, %v1712, %v970
      %v1746 = vsel %vm1718, %v1713, %v972
      %v1747 = vsel %vm1718, %v1714, %v974
      %v1748 = vsel %vm1718, %v1715, %v976
      %v1749 = vsel %vm1718, %v1716, %v978
      %v1750 = vsel %vm1718, %v1717, %v980
      %vm1751 = vcmask 130048
      %v1752 = vsel %vm1751, %v1719, %v1046
      %v1753 = vsel %vm1751, %v1720, %v1048
      %v1754 = vsel %vm1751, %v1721, %v1050
      %v1755 = vsel %vm1751, %v1722, %v1052
      %v1756 = vsel %vm1751, %v1723, %v1054
      %v1757 = vsel %vm1751, %v1724, %v1056
      %v1758 = vsel %vm1751, %v1725, %v1058
      %v1759 = vsel %vm1751, %v1726, %v1060
      %v1760 = vsel %vm1751, %v1727, %v1062
      %v1761 = vsel %vm1751, %v1728, %v1064
      %v1762 = vsel %vm1751, %v1729, %v1066
      %v1763 = vsel %vm1751, %v1730, %v1068
      %v1764 = vsel %vm1751, %v1731, %v1070
      %v1765 = vsel %vm1751, %v1732, %v1072
      %v1766 = vsel %vm1751, %v1733, %v1074
      %v1767 = vsel %vm1751, %v1734, %v1076
      %v1768 = vsel %vm1751, %v1735, %v1078
      %v1769 = vsel %vm1751, %v1736, %v1080
      %v1770 = vsel %vm1751, %v1737, %v1082
      %v1771 = vsel %vm1751, %v1738, %v1084
      %v1772 = vsel %vm1751, %v1739, %v1086
      %v1773 = vsel %vm1751, %v1740, %v1088
      %v1774 = vsel %vm1751, %v1741, %v1090
      %v1775 = vsel %vm1751, %v1742, %v1092
      %v1776 = vsel %vm1751, %v1743, %v1094
      %v1777 = vsel %vm1751, %v1744, %v1096
      %v1778 = vsel %vm1751, %v1745, %v1098
      %v1779 = vsel %vm1751, %v1746, %v1100
      %v1780 = vsel %vm1751, %v1747, %v1102
      %v1781 = vsel %vm1751, %v1748, %v1104
      %v1782 = vsel %vm1751, %v1749, %v1106
      %v1783 = vsel %vm1751, %v1750, %v1108
      %vm1784 = vcmask 162816
      %v1785 = vsel %vm1784, %v1752, %v1174
      %v1786 = vsel %vm1784, %v1753, %v1176
      %v1787 = vsel %vm1784, %v1754, %v1178
      %v1788 = vsel %vm1784, %v1755, %v1180
      %v1789 = vsel %vm1784, %v1756, %v1182
      %v1790 = vsel %vm1784, %v1757, %v1184
      %v1791 = vsel %vm1784, %v1758, %v1186
      %v1792 = vsel %vm1784, %v1759, %v1188
      %v1793 = vsel %vm1784, %v1760, %v1190
      %v1794 = vsel %vm1784, %v1761, %v1192
      %v1795 = vsel %vm1784, %v1762, %v1194
      %v1796 = vsel %vm1784, %v1763, %v1196
      %v1797 = vsel %vm1784, %v1764, %v1198
      %v1798 = vsel %vm1784, %v1765, %v1200
      %v1799 = vsel %vm1784, %v1766, %v1202
      %v1800 = vsel %vm1784, %v1767, %v1204
      %v1801 = vsel %vm1784, %v1768, %v1206
      %v1802 = vsel %vm1784, %v1769, %v1208
      %v1803 = vsel %vm1784, %v1770, %v1210
      %v1804 = vsel %vm1784, %v1771, %v1212
      %v1805 = vsel %vm1784, %v1772, %v1214
      %v1806 = vsel %vm1784, %v1773, %v1216
      %v1807 = vsel %vm1784, %v1774, %v1218
      %v1808 = vsel %vm1784, %v1775, %v1220
      %v1809 = vsel %vm1784, %v1776, %v1222
      %v1810 = vsel %vm1784, %v1777, %v1224
      %v1811 = vsel %vm1784, %v1778, %v1226
      %v1812 = vsel %vm1784, %v1779, %v1228
      %v1813 = vsel %vm1784, %v1780, %v1230
      %v1814 = vsel %vm1784, %v1781, %v1232
      %v1815 = vsel %vm1784, %v1782, %v1234
      %v1816 = vsel %vm1784, %v1783, %v1236
      %vm1817 = vcmask 195584
      %v1818 = vsel %vm1817, %v1785, %v1302
      %v1819 = vsel %vm1817, %v1786, %v1304
      %v1820 = vsel %vm1817, %v1787, %v1306
      %v1821 = vsel %vm1817, %v1788, %v1308
      %v1822 = vsel %vm1817, %v1789, %v1310
      %v1823 = vsel %vm1817, %v1790, %v1312
      %v1824 = vsel %vm1817, %v1791, %v1314
      %v1825 = vsel %vm1817, %v1792, %v1316
      %v1826 = vsel %vm1817, %v1793, %v1318
      %v1827 = vsel %vm1817, %v1794, %v1320
      %v1828 = vsel %vm1817, %v1795, %v1322
      %v1829 = vsel %vm1817, %v1796, %v1324
      %v1830 = vsel %vm1817, %v1797, %v1326
      %v1831 = vsel %vm1817, %v1798, %v1328
      %v1832 = vsel %vm1817, %v1799, %v1330
      %v1833 = vsel %vm1817, %v1800, %v1332
      %v1834 = vsel %vm1817, %v1801, %v1334
      %v1835 = vsel %vm1817, %v1802, %v1336
      %v1836 = vsel %vm1817, %v1803, %v1338
      %v1837 = vsel %vm1817, %v1804, %v1340
      %v1838 = vsel %vm1817, %v1805, %v1342
      %v1839 = vsel %vm1817, %v1806, %v1344
      %v1840 = vsel %vm1817, %v1807, %v1346
      %v1841 = vsel %vm1817, %v1808, %v1348
      %v1842 = vsel %vm1817, %v1809, %v1350
      %v1843 = vsel %vm1817, %v1810, %v1352
      %v1844 = vsel %vm1817, %v1811, %v1354
      %v1845 = vsel %vm1817, %v1812, %v1356
      %v1846 = vsel %vm1817, %v1813, %v1358
      %v1847 = vsel %vm1817, %v1814, %v1360
      %v1848 = vsel %vm1817, %v1815, %v1362
      %v1849 = vsel %vm1817, %v1816, %v1364
      %vm1850 = vcmask 228352
      %v1851 = vsel %vm1850, %v1818, %v1430
      %v1852 = vsel %vm1850, %v1819, %v1432
      %v1853 = vsel %vm1850, %v1820, %v1434
      %v1854 = vsel %vm1850, %v1821, %v1436
      %v1855 = vsel %vm1850, %v1822, %v1438
      %v1856 = vsel %vm1850, %v1823, %v1440
      %v1857 = vsel %vm1850, %v1824, %v1442
      %v1858 = vsel %vm1850, %v1825, %v1444
      %v1859 = vsel %vm1850, %v1826, %v1446
      %v1860 = vsel %vm1850, %v1827, %v1448
      %v1861 = vsel %vm1850, %v1828, %v1450
      %v1862 = vsel %vm1850, %v1829, %v1452
      %v1863 = vsel %vm1850, %v1830, %v1454
      %v1864 = vsel %vm1850, %v1831, %v1456
      %v1865 = vsel %vm1850, %v1832, %v1458
      %v1866 = vsel %vm1850, %v1833, %v1460
      %v1867 = vsel %vm1850, %v1834, %v1462
      %v1868 = vsel %vm1850, %v1835, %v1464
      %v1869 = vsel %vm1850, %v1836, %v1466
      %v1870 = vsel %vm1850, %v1837, %v1468
      %v1871 = vsel %vm1850, %v1838, %v1470
      %v1872 = vsel %vm1850, %v1839, %v1472
      %v1873 = vsel %vm1850, %v1840, %v1474
      %v1874 = vsel %vm1850, %v1841, %v1476
      %v1875 = vsel %vm1850, %v1842, %v1478
      %v1876 = vsel %vm1850, %v1843, %v1480
      %v1877 = vsel %vm1850, %v1844, %v1482
      %v1878 = vsel %vm1850, %v1845, %v1484
      %v1879 = vsel %vm1850, %v1846, %v1486
      %v1880 = vsel %vm1850, %v1847, %v1488
      %v1881 = vsel %vm1850, %v1848, %v1490
      %v1882 = vsel %vm1850, %v1849, %v1492
      %vm1883 = vcmask 261120
      %v1884 = vsel %vm1883, %v1851, %v1558
      %v1885 = vsel %vm1883, %v1852, %v1560
      %v1886 = vsel %vm1883, %v1853, %v1562
      %v1887 = vsel %vm1883, %v1854, %v1564
      %v1888 = vsel %vm1883, %v1855, %v1566
      %v1889 = vsel %vm1883, %v1856, %v1568
      %v1890 = vsel %vm1883, %v1857, %v1570
      %v1891 = vsel %vm1883, %v1858, %v1572
      %v1892 = vsel %vm1883, %v1859, %v1574
      %v1893 = vsel %vm1883, %v1860, %v1576
      %v1894 = vsel %vm1883, %v1861, %v1578
      %v1895 = vsel %vm1883, %v1862, %v1580
      %v1896 = vsel %vm1883, %v1863, %v1582
      %v1897 = vsel %vm1883, %v1864, %v1584
      %v1898 = vsel %vm1883, %v1865, %v1586
      %v1899 = vsel %vm1883, %v1866, %v1588
      %v1900 = vsel %vm1883, %v1867, %v1590
      %v1901 = vsel %vm1883, %v1868, %v1592
      %v1902 = vsel %vm1883, %v1869, %v1594
      %v1903 = vsel %vm1883, %v1870, %v1596
      %v1904 = vsel %vm1883, %v1871, %v1598
      %v1905 = vsel %vm1883, %v1872, %v1600
      %v1906 = vsel %vm1883, %v1873, %v1602
      %v1907 = vsel %vm1883, %v1874, %v1604
      %v1908 = vsel %vm1883, %v1875, %v1606
      %v1909 = vsel %vm1883, %v1876, %v1608
      %v1910 = vsel %vm1883, %v1877, %v1610
      %v1911 = vsel %vm1883, %v1878, %v1612
      %v1912 = vsel %vm1883, %v1879, %v1614
      %v1913 = vsel %vm1883, %v1880, %v1616
      %v1914 = vsel %vm1883, %v1881, %v1618
      %v1915 = vsel %vm1883, %v1882, %v1620
      %v1916 = vld [vmem:[%s1] sm:$0xff]
      %vm1917 = vcmask 293888
      %v1919 = vsel %vm1917, %v1916, 0
      %v1922 = vsel %vm1917, %v1884, 0
      %v1925 = vsel %vm1917, %v1885, 0
      %v1928 = vsel %vm1917, %v1886, 0
      %v1931 = vsel %vm1917, %v1887, 0
      %v1934 = vsel %vm1917, %v1888, 0
      %v1937 = vsel %vm1917, %v1889, 0
      %v1940 = vsel %vm1917, %v1890, 0
      %v1943 = vsel %vm1917, %v1891, 0
      %v1946 = vsel %vm1917, %v1892, 0
      %v1949 = vsel %vm1917, %v1893, 0
      %v1952 = vsel %vm1917, %v1894, 0
      %v1955 = vsel %vm1917, %v1895, 0
      %v1958 = vsel %vm1917, %v1896, 0
      %v1961 = vsel %vm1917, %v1897, 0
      %v1964 = vsel %vm1917, %v1898, 0
      %v1967 = vsel %vm1917, %v1899, 0
      %v1970 = vsel %vm1917, %v1900, 0
      %v1973 = vsel %vm1917, %v1901, 0
      %v1976 = vsel %vm1917, %v1902, 0
      %v1979 = vsel %vm1917, %v1903, 0
      %v1982 = vsel %vm1917, %v1904, 0
      %v1985 = vsel %vm1917, %v1905, 0
      %v1988 = vsel %vm1917, %v1906, 0
      %v1991 = vsel %vm1917, %v1907, 0
      %v1994 = vsel %vm1917, %v1908, 0
      %v1997 = vsel %vm1917, %v1909, 0
      %v2000 = vsel %vm1917, %v1910, 0
      %v2003 = vsel %vm1917, %v1911, 0
      %v2006 = vsel %vm1917, %v1912, 0
      %v2009 = vsel %vm1917, %v1913, 0
      %v2012 = vsel %vm1917, %v1914, 0
      %v2015 = vsel %vm1917, %v1915, 0
      %2017 = vmatprep.subr.mxu0 0.0
      %2018 = vmatpush1.xpose.msra.mxu0 %v1967
      %2019 = vmatprep.subr.mxu0 0.0
      %2020 = vmatpush1.xpose.msra.mxu0 %v1964
      %2021 = vmatprep.subr.mxu0 0.0
      %2022 = vmatpush1.xpose.msra.mxu0 %v1961
      %2023 = vmatprep.subr.mxu0 0.0
      %2024 = vmatpush1.xpose.msra.mxu0 %v1958
      %2025 = vmatprep.subr.mxu0 0.0
      %2026 = vmatpush1.xpose.msra.mxu0 %v1955
      %2027 = vmatprep.subr.mxu0 0.0
      %2028 = vmatpush1.xpose.msra.mxu0 %v1952
      %2029 = vmatprep.subr.mxu0 0.0
      %2030 = vmatpush1.xpose.msra.mxu0 %v1949
      %2031 = vmatprep.subr.mxu0 0.0
      %2032 = vmatpush1.xpose.msra.mxu0 %v1946
      %2033 = vmatprep.subr.mxu0 0.0
      %2034 = vmatpush1.xpose.msra.mxu0 %v1943
      %2035 = vmatprep.subr.mxu0 0.0
      %2036 = vmatpush1.xpose.msra.mxu0 %v1940
      %2037 = vmatprep.subr.mxu0 0.0
      %2038 = vmatpush1.xpose.msra.mxu0 %v1937
      %2039 = vmatprep.subr.mxu0 0.0
      %2040 = vmatpush1.xpose.msra.mxu0 %v1934
      %2041 = vmatprep.subr.mxu0 0.0
      %2042 = vmatpush1.xpose.msra.mxu0 %v1931
      %2043 = vmatprep.subr.mxu0 0.0
      %2044 = vmatpush1.xpose.msra.mxu0 %v1928
      %2045 = vmatprep.subr.mxu0 0.0
      %2046 = vmatpush1.xpose.msra.mxu0 %v1925
      %2047 = vmatprep.subr.mxu0 0.0
      %2048 = vmatpush1.xpose.msra.mxu0 %v1922
      %2049 = vmatprep.subr.mxu0 0.0
      %2050 = vmatpush2.xpose.msra.mxu0 %v2015
      %2051 = vmatprep.subr.mxu0 0.0
      %2052 = vmatpush2.xpose.msra.mxu0 %v2012
      %2053 = vmatprep.subr.mxu0 0.0
      %2054 = vmatpush2.xpose.msra.mxu0 %v2009
      %2055 = vmatprep.subr.mxu0 0.0
      %2056 = vmatpush2.xpose.msra.mxu0 %v2006
      %2057 = vmatprep.subr.mxu0 0.0
      %2058 = vmatpush2.xpose.msra.mxu0 %v2003
      %2059 = vmatprep.subr.mxu0 0.0
      %2060 = vmatpush2.xpose.msra.mxu0 %v2000
      %2061 = vmatprep.subr.mxu0 0.0
      %2062 = vmatpush2.xpose.msra.mxu0 %v1997
      %2063 = vmatprep.subr.mxu0 0.0
      %2064 = vmatpush2.xpose.msra.mxu0 %v1994
      %2065 = vmatprep.subr.mxu0 0.0
      %2066 = vmatpush2.xpose.msra.mxu0 %v1991
      %2067 = vmatprep.subr.mxu0 0.0
      %2068 = vmatpush2.xpose.msra.mxu0 %v1988
      %2069 = vmatprep.subr.mxu0 0.0
      %2070 = vmatpush2.xpose.msra.mxu0 %v1985
      %2071 = vmatprep.subr.mxu0 0.0
      %2072 = vmatpush2.xpose.msra.mxu0 %v1982
      %2073 = vmatprep.subr.mxu0 0.0
      %2074 = vmatpush2.xpose.msra.mxu0 %v1979
      %2075 = vmatprep.subr.mxu0 0.0
      %2076 = vmatpush2.xpose.msra.mxu0 %v1976
      %2077 = vmatprep.subr.mxu0 0.0
      %2078 = vmatpush2.xpose.msra.mxu0 %v1973
      %2079 = vmatprep.subr.mxu0 0.0
      %2080 = vmatpush2.xpose.msra.mxu0 %v1970
      %2081 = vmatprep.mubr.f32.mxu0 0.0
      %2082 = vmatmul.mubr.f32.gmra.mxu0 %v1919
      %v2083 = vpop.f32.mrf.mxu0
      %v2084 = vadd.f32 0.0, %v2083
      %v2085 = vpop.f32.mrf.mxu0
      %v2086 = vadd.f32 0.0, %v2085
      %2087 = vdwg.mxu0
      %2088 = vst [vmem:[%s210] sm:$0xff] %v2084
      %2089 = vst [vmem:[%s210 + $0x8] sm:$0xff] %v2086
      %v2090 = vadd.f32 %v2084, %v2086
      %2091 = vadd.xlane.f32.xlu0 %v2090
      %v2092 = vpop.xlane.xlu0 %2091
      %vm2093 = vcmask 7168
      %2094 = vst.msk [vmem:[%s214] sm:$0xff] %vm2093, %v2092
      %v2095 = vmul.f32 %v2084, %v2084
      %v2096 = vmul.f32 %v2086, %v2086
      %v2097 = vadd.f32 %v2095, %v2096
      %2098 = vadd.xlane.f32.xlu0 %v2097
      %v2099 = vpop.xlane.xlu0 %2098
      %2100 = vst.msk [vmem:[%s218] sm:$0xff] %vm2093, %v2099
      %p2101 = scmp.lt.s32.totalorder %s16, 1
      %s2102 = scalar_select %p2101, %s16, 1
      %s2103 = smul.addr %s2102, 2
      %s2104 = smul.addr %s2103, 8
      %s2105 = scalar_lea.vmem %s2, %s2104
      %p2106 = scmp.lt.s32.totalorder %s16, 1
      %s2107 = scalar_select %p2106, %s16, 1
      %s2108 = smul.addr %s2107, 8
      %s2109 = scalar_lea.vmem %s3, %s2108
      %p2110 = scmp.lt.s32.totalorder %s16, 1
      %s2111 = scalar_select %p2110, %s16, 1
      %s2112 = smul.addr %s2111, 8
      %s2113 = scalar_lea.vmem %s4, %s2112
      // Predicated region
      $region29: #{conv_bnr_forward.2} parent=27 // pred_check
        %p2114 = pneg %p81
      $region30: #{conv_bnr_forward.2} parent=27 // pred_check_branch
        %2116 = sbr.rel (%p2114) target = $region32
      $region31: #{conv_bnr_forward.2} parent=27 // pred_region
        _
      $region32: #{conv_bnr_forward.2} parent=27 // pred_fallthru
        _
      // Predicated region
      $region33: #{conv_bnr_forward.2} parent=27 // pred_check
        %p2117 = pneg %p107
      $region34: #{conv_bnr_forward.2} parent=27 // pred_check_branch
        %2119 = sbr.rel (%p2117) target = $region36
      $region35: #{conv_bnr_forward.2} parent=27 // pred_region
        _
      $region36: #{conv_bnr_forward.2} parent=27 // pred_fallthru
        _
      // Predicated region
      $region37: #{conv_bnr_forward.2} parent=27 // pred_check
        %p2120 = pneg %p133
      $region38: #{conv_bnr_forward.2} parent=27 // pred_check_branch
        %2122 = sbr.rel (%p2120) target = $region40
      $region39: #{conv_bnr_forward.2} parent=27 // pred_region
        _
      $region40: #{conv_bnr_forward.2} parent=27 // pred_fallthru
        _
    $region28: #{conv_bnr_forward.2} parent=5 // pred_fallthru
      _
    %p2123 = scmp.le.s32.totalorder 2, %s11
    // Predicated region
    $region41: #{conv_bnr_forward.2} parent=5 // pred_check
      %p2124 = pneg %p2123
    $region42: #{conv_bnr_forward.2} parent=5 // pred_check_branch
      %2126 = sbr.rel (%p2124) target = $region44
    $region43: #{conv_bnr_forward.2} parent=5 // pred_region
      %s2127 = ssub.s32 %s11, 2
      // Predicated region
      $region45: #{conv_bnr_forward.2} parent=43 // pred_check
        %p2128 = pneg %p87
      $region46: #{conv_bnr_forward.2} parent=43 // pred_check_branch
        %2130 = sbr.rel (%p2128) target = $region48
      $region47: #{conv_bnr_forward.2} parent=43 // pred_region
        %p2131 = scmp.lt.s32.totalorder %s17, 1
        %s2132 = scalar_select %p2131, %s17, 1
        %s2133 = smul.addr %s2132, 2
        %s2134 = smul.addr %s2133, 8
        %s2135 = scalar_lea.vmem %s2, %s2134
      $region48: #{conv_bnr_forward.2} parent=43 // pred_fallthru
        _
      // Predicated region
      $region49: #{conv_bnr_forward.2} parent=43 // pred_check
        %p2136 = pneg %p113
      $region50: #{conv_bnr_forward.2} parent=43 // pred_check_branch
        %2138 = sbr.rel (%p2136) target = $region52
      $region51: #{conv_bnr_forward.2} parent=43 // pred_region
        %p2139 = scmp.lt.s32.totalorder %s17, 1
        %s2140 = scalar_select %p2139, %s17, 1
        %s2141 = smul.addr %s2140, 8
        %s2142 = scalar_lea.vmem %s3, %s2141
      $region52: #{conv_bnr_forward.2} parent=43 // pred_fallthru
        _
      // Predicated region
      $region53: #{conv_bnr_forward.2} parent=43 // pred_check
        %p2143 = pneg %p139
      $region54: #{conv_bnr_forward.2} parent=43 // pred_check_branch
        %2145 = sbr.rel (%p2143) target = $region56
      $region55: #{conv_bnr_forward.2} parent=43 // pred_region
        %p2146 = scmp.lt.s32.totalorder %s17, 1
        %s2147 = scalar_select %p2146, %s17, 1
        %s2148 = smul.addr %s2147, 8
        %s2149 = scalar_lea.vmem %s4, %s2148
      $region56: #{conv_bnr_forward.2} parent=43 // pred_fallthru
        _
    $region44: #{conv_bnr_forward.2} parent=5 // pred_fallthru
      _
  $region6: #{conv_bnr_forward.2} parent=0 // loop_footer
    %s15 = sadd.s32 1, %s11
  $region7: #{conv_bnr_forward.2} parent=0 // loop_footer_branch
    %10 = sbr.rel target = $region3
  $region8: #{conv_bnr_forward.2} parent=0 // loop_exit
    _

</llo_original>
